<compile_context>
chip_gen: v7x
topology: tpu7x:2x2x1
jax: 0.10.0
libtpu: 0.0.40
codegen_flags: <defaults>
</compile_context>

<pallas_src>
import functools

import jax
import jax.numpy as jnp
from jax import lax
from jax.experimental import pallas as pl
from jax.experimental.pallas import tpu as pltpu

LN_EPS = 1e-5


def token_reduction_kernel(x_ref, w_aug_ref, rowsum_ref, wf_t_ref,
                           out_ref, sel_ref):
    """One grid step = one block of `bb` batch elements.

    x_ref     : (bb*N, C)  raw inputs, batch+spatial flattened (compute dtype)
    w_aug_ref : (T+1, C)   rows [ (w2 @ w1_dense) * gamma ; ones/C ]
    rowsum_ref: (T, 1)     f32 row-sums of the fused attention weight
    wf_t_ref  : (C, C)     f32 feat-conv weight, pre-transposed block-diagonal
    out_ref   : (bb, T, C)
    sel_ref   : (bb, T, N)
    """
    bb, num_tokens, n_spatial = sel_ref.shape

    w_aug = w_aug_ref[...]                              # (T+1, C)
    rowsum_w = rowsum_ref[...]                          # (T, 1) f32
    wf_t = wf_t_ref[...]                                # (C, C) f32

    # ---- LayerNorm folded into the logits matmul (one pass over x) -------
    x_all = x_ref[...]                                  # (bb*N, C)
    xsq = x_all * x_all                                 # the only VPU pass over x

    # Fused matmul: rows 0..T-1 are raw attention logits on the RAW input,
    # row T (the 1/C row) is the per-position mean.  Both arrive as lane
    # vectors in (T, bb*N) layout, so the LN statistics never need a
    # sublane->lane relayout and sel ends up directly in output layout.
    # TODO(synk): at production C, reorient to x @ W^T (M=N streams the MXU,
    # weight-stationary (C,T) RHS) + an XLU transpose of the (N,T) tile; at
    # these sizes the kernel is DMA/overhead bound, not MXU bound.
    raw_aug = lax.dot_general(
        w_aug, x_all, dimension_numbers=(((1,), (1,)), ((), ())),
        preferred_element_type=jnp.float32)             # (T+1, bb*N) f32
    meansq = lax.dot_general(
        w_aug[num_tokens:num_tokens + 1, :], xsq,
        dimension_numbers=(((1,), (1,)), ((), ())),
        preferred_element_type=jnp.float32)             # (1, bb*N)  = E[x^2]

    raw = raw_aug[:num_tokens, :]                       # (T, bb*N)
    mean = raw_aug[num_tokens:num_tokens + 1, :]        # (1, bb*N)
    var = meansq - mean * mean
    inv_std = lax.rsqrt(var + LN_EPS)                   # (1, bb*N) f32

    # logits[t, m] = sum_c w_att[t,c] * x_hat[m,c]
    #             = (raw[t,m] - rowsum_w[t] * mean[m]) * inv_std[m]
    # (LayerNorm beta only shifts each position's logits by a per-token
    #  constant along the softmax axis -> cancels exactly.)
    logits = (raw - rowsum_w * mean) * inv_std          # (T, bb*N) f32

    # ---- per-batch-element softmax + token features ----------------------
    # Small static unroll: only the softmax, the tiny (T,*) matmuls and the
    # stores live here (stats + the big matmul are hoisted above), so vreg
    # live ranges stay bounded even for larger bb.
    for b in range(bb):
        lg = logits[:, b * n_spatial:(b + 1) * n_spatial]    # (T, N)
        mx = jnp.max(lg, axis=-1, keepdims=True)
        e = jnp.exp(lg - mx)                                 # EUP
        denom = jnp.sum(e, axis=-1, keepdims=True)
        sel = e * pl.reciprocal(denom, approx=True)          # (T, N) f32

        # outputs = sel @ (x @ Wf^T) == (sel @ x) @ Wf^T  (re-associated:
        # the N x C x C feat conv becomes a tiny T x C x C epilogue matmul).
        xb = x_ref[b * n_spatial:(b + 1) * n_spatial, :]     # (N, C)
        tmp = jnp.dot(sel.astype(xb.dtype), xb,
                      preferred_element_type=jnp.float32)    # (T, C) f32
        outb = jnp.dot(tmp, wf_t,
                       preferred_element_type=jnp.float32)   # (T, C) f32 epilogue

        # dropout_rate = 0.0 -> identity.
        out_ref[b] = outb.astype(out_ref.dtype)
        sel_ref[b] = sel.astype(sel_ref.dtype)


def _vmem_capacity_bytes():
    try:
        return int(pltpu.get_tpu_info().vmem_capacity_bytes)
    except Exception:
        return 64 * 1024 * 1024        # conservative: v7x per-TensorCore VMEM


def _tensorcores_per_device():
    # v4 / v5p / v7x expose one JAX device per chip with 2 TensorCores
    # (megacore); v5e / v6e are single-TensorCore devices.
    try:
        kind = jax.devices()[0].device_kind.lower()
    except Exception:
        return 1
    return 2 if any(tag in kind for tag in ("v4", "v5p", "v7", "7x")) else 1


def _choose_block_b(batch, n, c, t, in_dsz, out_dsz, vmem_budget, multi_tc):
    """Largest per-grid-step batch block whose double-buffered blocks fit the
    VMEM budget.  Single-TC parts (v5e/v6e) may take the whole batch in one
    grid step (per-step pipeline overhead dominates at these sizes); megacore
    parts (v7x) keep >= 2 grid steps so both TensorCores get work."""
    weight_bytes = 2 * ((t + 1) * c * in_dsz + t * 4 + c * c * 4)
    best = 1
    for cand in range(1, batch + 1):
        if batch % cand:
            continue
        per_step = 2 * cand * (n * c * in_dsz + t * (c + n) * out_dsz)
        if per_step + weight_bytes > vmem_budget:
            continue
        if multi_tc and batch > 1 and batch // cand < 2:
            continue
        best = cand
    return best


def densify_grouped_weight(w_grouped, num_groups):
    """Grouped 1x1-conv weight (C_out, C_in//G) -> dense block-diagonal
    (C_out, C_in) matrix (C_out == C_in for these convs).  Exact."""
    c_out, gin = w_grouped.shape
    gout = c_out // num_groups
    dense = jnp.zeros((c_out, num_groups * gin), dtype=w_grouped.dtype)
    for g in range(num_groups):
        dense = dense.at[g * gout:(g + 1) * gout,
                         g * gin:(g + 1) * gin].set(
                             w_grouped[g * gout:(g + 1) * gout])
    return dense


@functools.partial(jax.jit,
                   static_argnames=("num_groups", "block_b", "compute_dtype",
                                    "vmem_limit_bytes"))
def _token_reduction_call(x_nhwc, gamma, beta, w1_grouped, w2, wf_grouped, *,
                          num_groups, block_b, compute_dtype, vmem_limit_bytes):
    # LayerNorm beta is provably a no-op for this module (softmax shift
    # invariance along the spatial axis); see kernel comment.
    del beta

    B, H, W, C = x_nhwc.shape
    N = H * W
    T = w2.shape[0]
    bb = block_b
    grid = (B // bb,)
    cdtype = jnp.dtype(compute_dtype)

    # ---- weight prep (free XLA ops, once per compile) ---------------------
    w1_dense = densify_grouped_weight(w1_grouped, num_groups).astype(jnp.float32)
    wf_dense = densify_grouped_weight(wf_grouped, num_groups).astype(jnp.float32)
    w_att = (w2.astype(jnp.float32) @ w1_dense) * gamma.astype(jnp.float32)[None, :]
    w_att_c = w_att.astype(cdtype)                                   # (T, C)
    # Row-sums over the *rounded* weights actually fed to the MXU, so the
    # in-kernel LayerNorm fold stays consistent in bf16 mode.
    rowsum_w = jnp.sum(w_att_c.astype(jnp.float32), axis=1, keepdims=True)
    inv_c_row = jnp.full((1, C), 1.0 / C, dtype=cdtype)
    w_aug = jnp.concatenate([w_att_c, inv_c_row], axis=0)            # (T+1, C)
    # Feat-conv weight stays f32: the epilogue matmul is tiny and keeping the
    # (sel @ x) intermediate in f32 avoids an extra bf16 rounding.
    wf_t = wf_dense.T                                                # (C, C) f32

    x2 = x_nhwc.reshape(B * N, C).astype(cdtype)                     # (B*N, C)

    in_dsz = cdtype.itemsize
    cost = pl.CostEstimate(
        flops=int(B * (2 * N * C * (T + 2) + N * C + 2 * T * N * C
                       + 2 * T * C * C + 8 * T * N)),
        transcendentals=int(B * (T * N + N + T)),
        bytes_accessed=int(in_dsz * (B * N * C + B * T * C + B * T * N
                                     + (T + 1) * C) + 4 * (T + C * C)),
    )

    # TODO(synk): for production-size N*C, add an N-tiling grid axis
    # ("arbitrary") with online-softmax accumulation, budgeted (with 2x
    # double-buffering of both the x and sel blocks) against v7x's 64 MiB.
    out, sel = pl.pallas_call(
        token_reduction_kernel,
        out_shape=(
            jax.ShapeDtypeStruct((B, T, C), cdtype),
            jax.ShapeDtypeStruct((B, T, N), cdtype),
        ),
        grid_spec=pltpu.PrefetchScalarGridSpec(
            num_scalar_prefetch=0,
            grid=grid,
            in_specs=[
                pl.BlockSpec((bb * N, C), lambda i: (i, 0)),   # inputs
                pl.BlockSpec((T + 1, C), lambda i: (0, 0)),    # fused attn W + 1/C row
                pl.BlockSpec((T, 1), lambda i: (0, 0)),        # rowsum(w_att), f32
                pl.BlockSpec((C, C), lambda i: (0, 0)),        # feat W (pre-T, f32)
                # NOTE: the constant-index weight inputs could be single-
                # buffered (pipeline_mode=pl.Buffered(1)) to save VMEM on
                # v7x; left at the default (negligible at these weight sizes).
            ],
            out_specs=[
                pl.BlockSpec((bb, T, C), lambda i: (i, 0, 0)),
                pl.BlockSpec((bb, T, N), lambda i: (i, 0, 0)),  # lane-dense (N)
            ],
        ),
        compiler_params=pltpu.CompilerParams(
            dimension_semantics=("parallel",),
            vmem_limit_bytes=int(vmem_limit_bytes)),
        cost_estimate=cost,
    )(x2, w_aug, rowsum_w, wf_t)
    return out, sel


def token_reduction(x_nhwc, gamma, beta, w1_grouped, w2, wf_grouped, num_groups,
                    block_b=None, compute_dtype=None):
    """TokenReduction forward.  Returns (outputs (B,T,C), selected (B,T,H*W))."""
    B, H, W, C = x_nhwc.shape
    N = H * W
    T = w2.shape[0]
    cdtype = (jnp.dtype(compute_dtype) if compute_dtype is not None
              else jnp.dtype(x_nhwc.dtype))
    in_dsz = out_dsz = cdtype.itemsize

    # Per-generation VMEM budgeting (v5e/v6e: 128 MiB, v7x: 64 MiB per core).
    vmem_cap = _vmem_capacity_bytes()
    block_budget = int(0.45 * vmem_cap)      # headroom for compiler scratch

    if block_b is None:
        bb = _choose_block_b(B, N, C, T, in_dsz, out_dsz, block_budget,
                             multi_tc=_tensorcores_per_device() > 1)
    else:
        bb = block_b
    assert B % bb == 0, "batch must be divisible by the per-step batch block"

    # Raise the scoped VMEM limit explicitly (v5e default is only ~16 MiB),
    # but never above ~0.75x physical so v7x's 64 MiB part is never exceeded.
    needed = (2 * bb * (N * C * in_dsz + T * (C + N) * out_dsz)
              + 2 * ((T + 1) * C * in_dsz + T * 4 + C * C * 4))
    vmem_limit = min(int(0.75 * vmem_cap), max(32 * 1024 * 1024, 2 * needed))

    return _token_reduction_call(
        x_nhwc, gamma, beta, w1_grouped, w2, wf_grouped,
        num_groups=num_groups, block_b=int(bb), compute_dtype=cdtype.name,
        vmem_limit_bytes=int(vmem_limit))


def reference_forward(x_nhwc, gamma, beta, w1_grouped, w2, wf_grouped,
                      num_groups):
    """Pure-JAX reference mirroring the PyTorch forward (un-fused, f32)."""
    B, H, W, C = x_nhwc.shape
    w1_dense = densify_grouped_weight(w1_grouped, num_groups)
    wf_dense = densify_grouped_weight(wf_grouped, num_groups)
    x = x_nhwc.reshape(B, H * W, C).astype(jnp.float32)
    mean = jnp.mean(x, axis=-1, keepdims=True)
    var = jnp.mean((x - mean) ** 2, axis=-1, keepdims=True)
    normed = (x - mean) / jnp.sqrt(var + LN_EPS) * gamma + beta
    h = normed @ w1_dense.T
    logits = h @ w2.T                          # (B, N, T)
    sel = jax.nn.softmax(jnp.transpose(logits, (0, 2, 1)), axis=-1)  # (B, T, N)
    feat = x @ wf_dense.T                      # (B, N, C)
    out = jnp.einsum('bsi,bid->bsd', sel, feat)
    return out, sel


if __name__ == "__main__":
    B, H, W = 4, 16, 16
    C = 32            # in_channels
    T = 8             # num_tokens
    G = 8             # num_groups
    N = H * W         # 256 (multiple of 128 -> lane-dense sel stores)

    key = jax.random.PRNGKey(0)
    kx, k1, k2, k3, kg, kb = jax.random.split(key, 6)

    x = jax.random.normal(kx, (B, H, W, C), dtype=jnp.float32)

    # Deterministic parameter init (shapes match the nn.Module's conv weights).
    # TODO(synk): kaiming_init not reproduced bit-exactly; deterministic normal init used instead.
    w1_grouped = jax.random.normal(k1, (C, C // G), jnp.float32) * 0.1   # Conv2d(C, C, 1, groups=G)
    w2 = jax.random.normal(k2, (T, C), jnp.float32) * 0.1                # Conv2d(C, T, 1)
    wf_grouped = jax.random.normal(k3, (C, C // G), jnp.float32) * 0.1   # Conv2d(C, C, 1, groups=G)
    gamma = 1.0 + 0.05 * jax.random.normal(kg, (C,), jnp.float32)        # LayerNorm weight
    beta = 0.05 * jax.random.normal(kb, (C,), jnp.float32)               # LayerNorm bias

    ref_out, ref_sel = reference_forward(x, gamma, beta, w1_grouped, w2,
                                         wf_grouped, G)

    # f32 path (matches the module's dtype semantics exactly).
    out, sel = token_reduction(x, gamma, beta, w1_grouped, w2, wf_grouped,
                               num_groups=G)
    out = jax.block_until_ready(out)
    sel = jax.block_until_ready(sel)
    assert out.shape == (B, T, C) and sel.shape == (B, T, N)
    assert jnp.allclose(out, ref_out, atol=3e-4, rtol=3e-4), \
        float(jnp.max(jnp.abs(out - ref_out)))
    # NOTE: pl.reciprocal(approx=True) -> sel rows sum to 1 only to ~2^-12.
    assert jnp.allclose(sel, ref_sel, atol=1e-4, rtol=1e-3), \
        float(jnp.max(jnp.abs(sel - ref_sel)))

    # bf16 compute/IO path (halves the dominant x / sel HBM streams; LN stats,
    # softmax and matmul accumulation stay f32).  Looser tolerance by design.
    out_bf, sel_bf = token_reduction(x, gamma, beta, w1_grouped, w2, wf_grouped,
                                     num_groups=G, compute_dtype=jnp.bfloat16)
    out_bf = jax.block_until_ready(out_bf)
    sel_bf = jax.block_until_ready(sel_bf)
    assert out_bf.dtype == jnp.bfloat16 and sel_bf.dtype == jnp.bfloat16
    assert jnp.allclose(out_bf.astype(jnp.float32), ref_out, atol=5e-2, rtol=5e-2)
    assert jnp.allclose(sel_bf.astype(jnp.float32), ref_sel, atol=5e-2, rtol=5e-2)

    print("KERNEL_OK")
</pallas_src>

<mosaic_0001>
module attributes {stable_mosaic.version = 11 : i64} {
  func.func @token_reduction_kernel(%arg0: i32, %arg1: memref<1024x32xf32, #tpu.memory_space<vmem>>, %arg2: memref<9x32xf32, #tpu.memory_space<vmem>>, %arg3: memref<8x1xf32, #tpu.memory_space<vmem>>, %arg4: memref<32x32xf32, #tpu.memory_space<vmem>>, %arg5: memref<4x8x32xf32, #tpu.memory_space<vmem>>, %arg6: memref<4x8x256xf32, #tpu.memory_space<vmem>>) attributes {dimension_semantics = [#tpu.dimension_semantics<parallel>], iteration_bounds = array<i64: 1>, scalar_prefetch = 0 : i64, scratch_operands = 0 : i64, tpu.core_type = #tpu.core_type<tc>, window_params = [{transform_indices = @transform_0, window_bounds = array<i64: 1024, 32>}, {pipeline_mode = #tpu.pipeline_mode<synchronous>, transform_indices = @transform_1, window_bounds = array<i64: 9, 32>}, {pipeline_mode = #tpu.pipeline_mode<synchronous>, transform_indices = @transform_2, window_bounds = array<i64: 8, 1>}, {pipeline_mode = #tpu.pipeline_mode<synchronous>, transform_indices = @transform_3, window_bounds = array<i64: 32, 32>}, {transform_indices = @transform_4, window_bounds = array<i64: 4, 8, 32>}, {transform_indices = @transform_5, window_bounds = array<i64: 4, 8, 256>}]} {
    %c0 = arith.constant 0 : index
    %c0_0 = arith.constant 0 : index
    %0 = vector.load %arg2[%c0, %c0_0] : memref<9x32xf32, #tpu.memory_space<vmem>>, vector<9x32xf32>
    %c0_1 = arith.constant 0 : index
    %c0_2 = arith.constant 0 : index
    %1 = vector.load %arg3[%c0_1, %c0_2] : memref<8x1xf32, #tpu.memory_space<vmem>>, vector<8x1xf32>
    %c0_3 = arith.constant 0 : index
    %c0_4 = arith.constant 0 : index
    %2 = vector.load %arg4[%c0_3, %c0_4] : memref<32x32xf32, #tpu.memory_space<vmem>>, vector<32x32xf32>
    %c0_5 = arith.constant 0 : index
    %c0_6 = arith.constant 0 : index
    %3 = vector.load %arg1[%c0_5, %c0_6] : memref<1024x32xf32, #tpu.memory_space<vmem>>, vector<1024x32xf32>
    %4 = arith.mulf %3, %3 : vector<1024x32xf32>
    %cst = arith.constant dense<0.000000e+00> : vector<9x1024xf32>
    %5 = tpu.matmul %0, %3, %cst {dimension_numbers = #tpu.dot_dimension_numbers<[1], [1], [0], [0], [0, 0, 1, 0], [], []>} : vector<9x32xf32>, vector<1024x32xf32>, vector<9x1024xf32> -> vector<9x1024xf32>
    %6 = vector.extract_strided_slice %0 {offsets = [8, 0], sizes = [1, 32], strides = [1, 1]} : vector<9x32xf32> to vector<1x32xf32>
    %cst_7 = arith.constant dense<0.000000e+00> : vector<1x1024xf32>
    %7 = tpu.matmul %6, %4, %cst_7 {dimension_numbers = #tpu.dot_dimension_numbers<[1], [1], [0], [0], [0, 0, 1, 0], [], []>} : vector<1x32xf32>, vector<1024x32xf32>, vector<1x1024xf32> -> vector<1x1024xf32>
    %8 = vector.extract_strided_slice %5 {offsets = [0, 0], sizes = [8, 1024], strides = [1, 1]} : vector<9x1024xf32> to vector<8x1024xf32>
    %9 = vector.extract_strided_slice %5 {offsets = [8, 0], sizes = [1, 1024], strides = [1, 1]} : vector<9x1024xf32> to vector<1x1024xf32>
    %10 = arith.mulf %9, %9 : vector<1x1024xf32>
    %11 = arith.subf %7, %10 : vector<1x1024xf32>
    %cst_8 = arith.constant 9.99999974E-6 : f32
    %12 = vector.broadcast %cst_8 : f32 to vector<1x1024xf32>
    %13 = arith.addf %11, %12 : vector<1x1024xf32>
    %14 = math.rsqrt %13 : vector<1x1024xf32>
    %15 = vector.broadcast %1 : vector<8x1xf32> to vector<8x1024xf32>
    %16 = vector.broadcast %9 : vector<1x1024xf32> to vector<8x1024xf32>
    %17 = arith.mulf %15, %16 : vector<8x1024xf32>
    %18 = arith.subf %8, %17 : vector<8x1024xf32>
    %19 = vector.broadcast %14 : vector<1x1024xf32> to vector<8x1024xf32>
    %20 = arith.mulf %18, %19 : vector<8x1024xf32>
    %21 = vector.extract_strided_slice %20 {offsets = [0, 0], sizes = [8, 256], strides = [1, 1]} : vector<8x1024xf32> to vector<8x256xf32>
    %cst_9 = arith.constant dense<0xFF800000> : vector<8xf32>
    %22 = vector.multi_reduction <maximumf>, %21, %cst_9 [1] : vector<8x256xf32> to vector<8xf32>
    %23 = vector.shape_cast %22 : vector<8xf32> to vector<8x1xf32>
    %24 = vector.broadcast %23 : vector<8x1xf32> to vector<8x256xf32>
    %25 = arith.subf %21, %24 : vector<8x256xf32>
    %26 = math.exp %25 : vector<8x256xf32>
    %cst_10 = arith.constant dense<0.000000e+00> : vector<8xf32>
    %27 = vector.multi_reduction <add>, %26, %cst_10 [1] : vector<8x256xf32> to vector<8xf32>
    %28 = vector.shape_cast %27 : vector<8xf32> to vector<8x1xf32>
    %29 = tpu.reciprocal %28 {approx = true} : vector<8x1xf32> -> vector<8x1xf32>
    %30 = vector.broadcast %29 : vector<8x1xf32> to vector<8x256xf32>
    %31 = arith.mulf %26, %30 : vector<8x256xf32>
    %c0_11 = arith.constant 0 : index
    %c0_12 = arith.constant 0 : index
    %32 = vector.load %arg1[%c0_11, %c0_12] : memref<1024x32xf32, #tpu.memory_space<vmem>>, vector<256x32xf32>
    %cst_13 = arith.constant dense<0.000000e+00> : vector<8x32xf32>
    %33 = tpu.matmul %31, %32, %cst_13 {dimension_numbers = #tpu.dot_dimension_numbers<[1], [0], [0], [1], [0, 0, 1, 1], [], []>} : vector<8x256xf32>, vector<256x32xf32>, vector<8x32xf32> -> vector<8x32xf32>
    %cst_14 = arith.constant dense<0.000000e+00> : vector<8x32xf32>
    %34 = tpu.matmul %33, %2, %cst_14 {dimension_numbers = #tpu.dot_dimension_numbers<[1], [0], [0], [1], [0, 0, 1, 1], [], []>} : vector<8x32xf32>, vector<32x32xf32>, vector<8x32xf32> -> vector<8x32xf32>
    %c0_15 = arith.constant 0 : index
    %c0_16 = arith.constant 0 : index
    %c0_17 = arith.constant 0 : index
    %35 = vector.load %arg5[%c0_15, %c0_16, %c0_17] : memref<4x8x32xf32, #tpu.memory_space<vmem>>, vector<1x8x32xf32>
    %36 = vector.shape_cast %35 : vector<1x8x32xf32> to vector<8x32xf32>
    %37 = vector.shape_cast %34 : vector<8x32xf32> to vector<1x8x32xf32>
    tpu.vector_store %arg5[%c0_15, %c0_16, %c0_17], %37 {strides = array<i32>} : memref<4x8x32xf32, #tpu.memory_space<vmem>>, vector<1x8x32xf32>,
    %c0_18 = arith.constant 0 : index
    %c0_19 = arith.constant 0 : index
    %c0_20 = arith.constant 0 : index
    %38 = vector.load %arg6[%c0_18, %c0_19, %c0_20] : memref<4x8x256xf32, #tpu.memory_space<vmem>>, vector<1x8x256xf32>
    %39 = vector.shape_cast %38 : vector<1x8x256xf32> to vector<8x256xf32>
    %40 = vector.shape_cast %31 : vector<8x256xf32> to vector<1x8x256xf32>
    tpu.vector_store %arg6[%c0_18, %c0_19, %c0_20], %40 {strides = array<i32>} : memref<4x8x256xf32, #tpu.memory_space<vmem>>, vector<1x8x256xf32>,
    %41 = vector.extract_strided_slice %20 {offsets = [0, 256], sizes = [8, 256], strides = [1, 1]} : vector<8x1024xf32> to vector<8x256xf32>
    %cst_21 = arith.constant dense<0xFF800000> : vector<8xf32>
    %42 = vector.multi_reduction <maximumf>, %41, %cst_21 [1] : vector<8x256xf32> to vector<8xf32>
    %43 = vector.shape_cast %42 : vector<8xf32> to vector<8x1xf32>
    %44 = vector.broadcast %43 : vector<8x1xf32> to vector<8x256xf32>
    %45 = arith.subf %41, %44 : vector<8x256xf32>
    %46 = math.exp %45 : vector<8x256xf32>
    %cst_22 = arith.constant dense<0.000000e+00> : vector<8xf32>
    %47 = vector.multi_reduction <add>, %46, %cst_22 [1] : vector<8x256xf32> to vector<8xf32>
    %48 = vector.shape_cast %47 : vector<8xf32> to vector<8x1xf32>
    %49 = tpu.reciprocal %48 {approx = true} : vector<8x1xf32> -> vector<8x1xf32>
    %50 = vector.broadcast %49 : vector<8x1xf32> to vector<8x256xf32>
    %51 = arith.mulf %46, %50 : vector<8x256xf32>
    %c256 = arith.constant 256 : index
    %c0_23 = arith.constant 0 : index
    %52 = vector.load %arg1[%c256, %c0_23] : memref<1024x32xf32, #tpu.memory_space<vmem>>, vector<256x32xf32>
    %cst_24 = arith.constant dense<0.000000e+00> : vector<8x32xf32>
    %53 = tpu.matmul %51, %52, %cst_24 {dimension_numbers = #tpu.dot_dimension_numbers<[1], [0], [0], [1], [0, 0, 1, 1], [], []>} : vector<8x256xf32>, vector<256x32xf32>, vector<8x32xf32> -> vector<8x32xf32>
    %cst_25 = arith.constant dense<0.000000e+00> : vector<8x32xf32>
    %54 = tpu.matmul %53, %2, %cst_25 {dimension_numbers = #tpu.dot_dimension_numbers<[1], [0], [0], [1], [0, 0, 1, 1], [], []>} : vector<8x32xf32>, vector<32x32xf32>, vector<8x32xf32> -> vector<8x32xf32>
    %c1 = arith.constant 1 : index
    %c0_26 = arith.constant 0 : index
    %c0_27 = arith.constant 0 : index
    %55 = vector.load %arg5[%c1, %c0_26, %c0_27] : memref<4x8x32xf32, #tpu.memory_space<vmem>>, vector<1x8x32xf32>
    %56 = vector.shape_cast %55 : vector<1x8x32xf32> to vector<8x32xf32>
    %57 = vector.shape_cast %54 : vector<8x32xf32> to vector<1x8x32xf32>
    tpu.vector_store %arg5[%c1, %c0_26, %c0_27], %57 {strides = array<i32>} : memref<4x8x32xf32, #tpu.memory_space<vmem>>, vector<1x8x32xf32>,
    %c1_28 = arith.constant 1 : index
    %c0_29 = arith.constant 0 : index
    %c0_30 = arith.constant 0 : index
    %58 = vector.load %arg6[%c1_28, %c0_29, %c0_30] : memref<4x8x256xf32, #tpu.memory_space<vmem>>, vector<1x8x256xf32>
    %59 = vector.shape_cast %58 : vector<1x8x256xf32> to vector<8x256xf32>
    %60 = vector.shape_cast %51 : vector<8x256xf32> to vector<1x8x256xf32>
    tpu.vector_store %arg6[%c1_28, %c0_29, %c0_30], %60 {strides = array<i32>} : memref<4x8x256xf32, #tpu.memory_space<vmem>>, vector<1x8x256xf32>,
    %61 = vector.extract_strided_slice %20 {offsets = [0, 512], sizes = [8, 256], strides = [1, 1]} : vector<8x1024xf32> to vector<8x256xf32>
    %cst_31 = arith.constant dense<0xFF800000> : vector<8xf32>
    %62 = vector.multi_reduction <maximumf>, %61, %cst_31 [1] : vector<8x256xf32> to vector<8xf32>
    %63 = vector.shape_cast %62 : vector<8xf32> to vector<8x1xf32>
    %64 = vector.broadcast %63 : vector<8x1xf32> to vector<8x256xf32>
    %65 = arith.subf %61, %64 : vector<8x256xf32>
    %66 = math.exp %65 : vector<8x256xf32>
    %cst_32 = arith.constant dense<0.000000e+00> : vector<8xf32>
    %67 = vector.multi_reduction <add>, %66, %cst_32 [1] : vector<8x256xf32> to vector<8xf32>
    %68 = vector.shape_cast %67 : vector<8xf32> to vector<8x1xf32>
    %69 = tpu.reciprocal %68 {approx = true} : vector<8x1xf32> -> vector<8x1xf32>
    %70 = vector.broadcast %69 : vector<8x1xf32> to vector<8x256xf32>
    %71 = arith.mulf %66, %70 : vector<8x256xf32>
    %c512 = arith.constant 512 : index
    %c0_33 = arith.constant 0 : index
    %72 = vector.load %arg1[%c512, %c0_33] : memref<1024x32xf32, #tpu.memory_space<vmem>>, vector<256x32xf32>
    %cst_34 = arith.constant dense<0.000000e+00> : vector<8x32xf32>
    %73 = tpu.matmul %71, %72, %cst_34 {dimension_numbers = #tpu.dot_dimension_numbers<[1], [0], [0], [1], [0, 0, 1, 1], [], []>} : vector<8x256xf32>, vector<256x32xf32>, vector<8x32xf32> -> vector<8x32xf32>
    %cst_35 = arith.constant dense<0.000000e+00> : vector<8x32xf32>
    %74 = tpu.matmul %73, %2, %cst_35 {dimension_numbers = #tpu.dot_dimension_numbers<[1], [0], [0], [1], [0, 0, 1, 1], [], []>} : vector<8x32xf32>, vector<32x32xf32>, vector<8x32xf32> -> vector<8x32xf32>
    %c2 = arith.constant 2 : index
    %c0_36 = arith.constant 0 : index
    %c0_37 = arith.constant 0 : index
    %75 = vector.load %arg5[%c2, %c0_36, %c0_37] : memref<4x8x32xf32, #tpu.memory_space<vmem>>, vector<1x8x32xf32>
    %76 = vector.shape_cast %75 : vector<1x8x32xf32> to vector<8x32xf32>
    %77 = vector.shape_cast %74 : vector<8x32xf32> to vector<1x8x32xf32>
    tpu.vector_store %arg5[%c2, %c0_36, %c0_37], %77 {strides = array<i32>} : memref<4x8x32xf32, #tpu.memory_space<vmem>>, vector<1x8x32xf32>,
    %c2_38 = arith.constant 2 : index
    %c0_39 = arith.constant 0 : index
    %c0_40 = arith.constant 0 : index
    %78 = vector.load %arg6[%c2_38, %c0_39, %c0_40] : memref<4x8x256xf32, #tpu.memory_space<vmem>>, vector<1x8x256xf32>
    %79 = vector.shape_cast %78 : vector<1x8x256xf32> to vector<8x256xf32>
    %80 = vector.shape_cast %71 : vector<8x256xf32> to vector<1x8x256xf32>
    tpu.vector_store %arg6[%c2_38, %c0_39, %c0_40], %80 {strides = array<i32>} : memref<4x8x256xf32, #tpu.memory_space<vmem>>, vector<1x8x256xf32>,
    %81 = vector.extract_strided_slice %20 {offsets = [0, 768], sizes = [8, 256], strides = [1, 1]} : vector<8x1024xf32> to vector<8x256xf32>
    %cst_41 = arith.constant dense<0xFF800000> : vector<8xf32>
    %82 = vector.multi_reduction <maximumf>, %81, %cst_41 [1] : vector<8x256xf32> to vector<8xf32>
    %83 = vector.shape_cast %82 : vector<8xf32> to vector<8x1xf32>
    %84 = vector.broadcast %83 : vector<8x1xf32> to vector<8x256xf32>
    %85 = arith.subf %81, %84 : vector<8x256xf32>
    %86 = math.exp %85 : vector<8x256xf32>
    %cst_42 = arith.constant dense<0.000000e+00> : vector<8xf32>
    %87 = vector.multi_reduction <add>, %86, %cst_42 [1] : vector<8x256xf32> to vector<8xf32>
    %88 = vector.shape_cast %87 : vector<8xf32> to vector<8x1xf32>
    %89 = tpu.reciprocal %88 {approx = true} : vector<8x1xf32> -> vector<8x1xf32>
    %90 = vector.broadcast %89 : vector<8x1xf32> to vector<8x256xf32>
    %91 = arith.mulf %86, %90 : vector<8x256xf32>
    %c768 = arith.constant 768 : index
    %c0_43 = arith.constant 0 : index
    %92 = vector.load %arg1[%c768, %c0_43] : memref<1024x32xf32, #tpu.memory_space<vmem>>, vector<256x32xf32>
    %cst_44 = arith.constant dense<0.000000e+00> : vector<8x32xf32>
    %93 = tpu.matmul %91, %92, %cst_44 {dimension_numbers = #tpu.dot_dimension_numbers<[1], [0], [0], [1], [0, 0, 1, 1], [], []>} : vector<8x256xf32>, vector<256x32xf32>, vector<8x32xf32> -> vector<8x32xf32>
    %cst_45 = arith.constant dense<0.000000e+00> : vector<8x32xf32>
    %94 = tpu.matmul %93, %2, %cst_45 {dimension_numbers = #tpu.dot_dimension_numbers<[1], [0], [0], [1], [0, 0, 1, 1], [], []>} : vector<8x32xf32>, vector<32x32xf32>, vector<8x32xf32> -> vector<8x32xf32>
    %c3 = arith.constant 3 : index
    %c0_46 = arith.constant 0 : index
    %c0_47 = arith.constant 0 : index
    %95 = vector.load %arg5[%c3, %c0_46, %c0_47] : memref<4x8x32xf32, #tpu.memory_space<vmem>>, vector<1x8x32xf32>
    %96 = vector.shape_cast %95 : vector<1x8x32xf32> to vector<8x32xf32>
    %97 = vector.shape_cast %94 : vector<8x32xf32> to vector<1x8x32xf32>
    tpu.vector_store %arg5[%c3, %c0_46, %c0_47], %97 {strides = array<i32>} : memref<4x8x32xf32, #tpu.memory_space<vmem>>, vector<1x8x32xf32>,
    %c3_48 = arith.constant 3 : index
    %c0_49 = arith.constant 0 : index
    %c0_50 = arith.constant 0 : index
    %98 = vector.load %arg6[%c3_48, %c0_49, %c0_50] : memref<4x8x256xf32, #tpu.memory_space<vmem>>, vector<1x8x256xf32>
    %99 = vector.shape_cast %98 : vector<1x8x256xf32> to vector<8x256xf32>
    %100 = vector.shape_cast %91 : vector<8x256xf32> to vector<1x8x256xf32>
    tpu.vector_store %arg6[%c3_48, %c0_49, %c0_50], %100 {strides = array<i32>} : memref<4x8x256xf32, #tpu.memory_space<vmem>>, vector<1x8x256xf32>,
    return
  }
  func.func @transform_0(%arg0: i32) -> (i32, i32) {
    %c0_i32 = arith.constant 0 : i32
    %c0_i32_0 = arith.constant 0 : i32
    return %arg0, %c0_i32 : i32, i32
  }
  func.func @transform_1(%arg0: i32) -> (i32, i32) {
    %c0_i32 = arith.constant 0 : i32
    %c0_i32_0 = arith.constant 0 : i32
    %c0_i32_1 = arith.constant 0 : i32
    return %c0_i32, %c0_i32_0 : i32, i32
  }
  func.func @transform_2(%arg0: i32) -> (i32, i32) {
    %c0_i32 = arith.constant 0 : i32
    %c0_i32_0 = arith.constant 0 : i32
    %c0_i32_1 = arith.constant 0 : i32
    return %c0_i32, %c0_i32_0 : i32, i32
  }
  func.func @transform_3(%arg0: i32) -> (i32, i32) {
    %c0_i32 = arith.constant 0 : i32
    %c0_i32_0 = arith.constant 0 : i32
    %c0_i32_1 = arith.constant 0 : i32
    return %c0_i32, %c0_i32_0 : i32, i32
  }
  func.func @transform_4(%arg0: i32) -> (i32, i32, i32) {
    %c0_i32 = arith.constant 0 : i32
    %c0_i32_0 = arith.constant 0 : i32
    %c0_i32_1 = arith.constant 0 : i32
    return %arg0, %c0_i32, %c0_i32_0 : i32, i32, i32
  }
  func.func @transform_5(%arg0: i32) -> (i32, i32, i32) {
    %c0_i32 = arith.constant 0 : i32
    %c0_i32_0 = arith.constant 0 : i32
    %c0_i32_1 = arith.constant 0 : i32
    return %arg0, %c0_i32, %c0_i32_0 : i32, i32, i32
  }
}

</mosaic_0001>

<llo_original>
// kernel: _token_reduction_call.1
$region0: #{_token_reduction_call.1}
  #allocation0 [shape = 'u32[]', space=smem, size = 0x4, offset = 0x4, fixed_abs, tag = 'smem constant byte address 0x4 - core index']
  #allocation1 [shape = 'u32[144,128]{1,0:T(1,128)}', space=vmem, size = 0x12000, scoped, tag = 'internal scratch']
  %s0 = inlined_call_operand.hbm [shape: f32[1024,32], index: 0, kind: input, shape index: {}]
  %s1 = inlined_call_operand.vmem [shape: f32[9,32], index: 1, kind: input, shape index: {}]
  %s2 = inlined_call_operand.vmem [shape: f32[8,1], index: 2, kind: input, shape index: {}]
  %s3 = inlined_call_operand.vmem [shape: f32[32,32], index: 3, kind: input, shape index: {}]
  %s4 = inlined_call_operand.hbm [shape: f32[4,8,32], index: 4, kind: output, shape index: {0}]
  %s5 = inlined_call_operand.hbm [shape: f32[4,8,256], index: 5, kind: output, shape index: {1}]
  %6 = xla_tuple %s4, %s5
  %s7 = sld [smem:[#allocation0]]
  $region38: #{_token_reduction_call.1} parent=0
    _
  %s9 = ssub.s32 1, %s7
  %s10 = scalar_select 0, %s9, %s7
  $region1: #{_token_reduction_call.1} parent=0
    #allocation2 [shape = 'u8[524288]{0}', space=vmem, size = 0x80000, scoped, tag = 'input window, operand 0, single buffered']
    #allocation3 [shape = 's32[1]{0}', space=sflag, size = 0x4, scoped, tag = 'scoped memory for _token_reduction_call.1']
    #allocation4 [shape = 's32[1]{0}', space=sflag, size = 0x4, scoped, tag = 'scoped memory for _token_reduction_call.1']
    #allocation5 [shape = 'u8[16384]{0}', space=vmem, size = 0x4000, scoped, tag = 'output window, operand 0, single buffered']
    #allocation6 [shape = 'u8[32768]{0}', space=vmem, size = 0x8000, scoped, tag = 'output window, operand 1, single buffered']
    #allocation7 [shape = 's32[1]{0}', space=sflag, size = 0x4, scoped, tag = 'scoped memory for _token_reduction_call.1']
    %11 = vsyncpa [#allocation3], 0
    %12 = vsyncpa [#allocation4], 0
    %13 = vsyncpa [#allocation7], 0
    // Predicated region
    $region2: #{_token_reduction_call.1} parent=1 // pred_check
      _
    $region3: #{_token_reduction_call.1} parent=1 // pred_check_branch
      %15 = sbr.rel (0) target = $region5
    $region4: #{_token_reduction_call.1} parent=1 // pred_region
      %s17 = ssub.s32 16384, 16384
      %18 = vsyncadd [#allocation3], %s17
      %s19 = sshll.u32 [#allocation2], 4
      %s20 = int_to_ptr.vmem [resolvable:$true] %s19
      %25 = dma.hbm_to_vmem [thread:$0]  %s0, 16384, %s20, [#allocation3], 128, 128, 8
    $region5: #{_token_reduction_call.1} parent=1 // pred_fallthru
      _
    // Predicated region
    $region6: #{_token_reduction_call.1} parent=1 // pred_check
      _
    $region7: #{_token_reduction_call.1} parent=1 // pred_check_branch
      %27 = sbr.rel (0) target = $region9
    $region8: #{_token_reduction_call.1} parent=1 // pred_region
      _
    $region9: #{_token_reduction_call.1} parent=1 // pred_fallthru
      _
    // Predicated region
    $region10: #{_token_reduction_call.1} parent=1 // pred_check
      _
    $region11: #{_token_reduction_call.1} parent=1 // pred_check_branch
      %29 = sbr.rel (0) target = $region13
    $region12: #{_token_reduction_call.1} parent=1 // pred_region
      _
    $region13: #{_token_reduction_call.1} parent=1 // pred_fallthru
      _
    // Predicated region
    $region14: #{_token_reduction_call.1} parent=1 // pred_check
      _
    $region15: #{_token_reduction_call.1} parent=1 // pred_check_branch
      %31 = sbr.rel (0) target = $region17
    $region16: #{_token_reduction_call.1} parent=1 // pred_region
      _
    $region17: #{_token_reduction_call.1} parent=1 // pred_fallthru
      _
    // Predicated region
    $region18: #{_token_reduction_call.1} parent=1 // pred_check
      _
    $region19: #{_token_reduction_call.1} parent=1 // pred_check_branch
      %33 = sbr.rel (0) target = $region21
    $region20: #{_token_reduction_call.1} parent=1 // pred_region
      %34 = dma.done [#allocation3], 16384
    $region21: #{_token_reduction_call.1} parent=1 // pred_fallthru
      _
    %v35 = vld [vmem:[%s1] sm:$0xff]
    %v36 = vld [vmem:[%s1 + $0x8] sm:$0x1]
    %v37 = vld [vmem:[%s2] sm:$0xff]
    %v38 = vld [vmem:[%s3] sm:$0xff]
    %v39 = vld [vmem:[%s3 + $0x8] sm:$0xff]
    %v40 = vld [vmem:[%s3 + $0x10] sm:$0xff]
    %v41 = vld [vmem:[%s3 + $0x18] sm:$0xff]
    %v42 = vld [vmem:[#allocation2] sm:$0xff]
    %v43 = vld [vmem:[#allocation2 + $0x8] sm:$0xff]
    %v44 = vld [vmem:[#allocation2 + $0x10] sm:$0xff]
    %v45 = vld [vmem:[#allocation2 + $0x18] sm:$0xff]
    %v46 = vld [vmem:[#allocation2 + $0x20] sm:$0xff]
    %v47 = vld [vmem:[#allocation2 + $0x28] sm:$0xff]
    %v48 = vld [vmem:[#allocation2 + $0x30] sm:$0xff]
    %v49 = vld [vmem:[#allocation2 + $0x38] sm:$0xff]
    %v50 = vld [vmem:[#allocation2 + $0x40] sm:$0xff]
    %v51 = vld [vmem:[#allocation2 + $0x48] sm:$0xff]
    %v52 = vld [vmem:[#allocation2 + $0x50] sm:$0xff]
    %v53 = vld [vmem:[#allocation2 + $0x58] sm:$0xff]
    %v54 = vld [vmem:[#allocation2 + $0x60] sm:$0xff]
    %v55 = vld [vmem:[#allocation2 + $0x68] sm:$0xff]
    %v56 = vld [vmem:[#allocation2 + $0x70] sm:$0xff]
    %v57 = vld [vmem:[#allocation2 + $0x78] sm:$0xff]
    %v58 = vld [vmem:[#allocation2 + $0x80] sm:$0xff]
    %v59 = vld [vmem:[#allocation2 + $0x88] sm:$0xff]
    %v60 = vld [vmem:[#allocation2 + $0x90] sm:$0xff]
    %v61 = vld [vmem:[#allocation2 + $0x98] sm:$0xff]
    %v62 = vld [vmem:[#allocation2 + $0xa0] sm:$0xff]
    %v63 = vld [vmem:[#allocation2 + $0xa8] sm:$0xff]
    %v64 = vld [vmem:[#allocation2 + $0xb0] sm:$0xff]
    %v65 = vld [vmem:[#allocation2 + $0xb8] sm:$0xff]
    %v66 = vld [vmem:[#allocation2 + $0xc0] sm:$0xff]
    %v67 = vld [vmem:[#allocation2 + $0xc8] sm:$0xff]
    %v68 = vld [vmem:[#allocation2 + $0xd0] sm:$0xff]
    %v69 = vld [vmem:[#allocation2 + $0xd8] sm:$0xff]
    %v70 = vld [vmem:[#allocation2 + $0xe0] sm:$0xff]
    %v71 = vld [vmem:[#allocation2 + $0xe8] sm:$0xff]
    %v72 = vld [vmem:[#allocation2 + $0xf0] sm:$0xff]
    %v73 = vld [vmem:[#allocation2 + $0xf8] sm:$0xff]
    %v74 = vld [vmem:[#allocation2 + $0x100] sm:$0xff]
    %v75 = vld [vmem:[#allocation2 + $0x108] sm:$0xff]
    %v76 = vld [vmem:[#allocation2 + $0x110] sm:$0xff]
    %v77 = vld [vmem:[#allocation2 + $0x118] sm:$0xff]
    %v78 = vld [vmem:[#allocation2 + $0x120] sm:$0xff]
    %v79 = vld [vmem:[#allocation2 + $0x128] sm:$0xff]
    %v80 = vld [vmem:[#allocation2 + $0x130] sm:$0xff]
    %v81 = vld [vmem:[#allocation2 + $0x138] sm:$0xff]
    %v82 = vld [vmem:[#allocation2 + $0x140] sm:$0xff]
    %v83 = vld [vmem:[#allocation2 + $0x148] sm:$0xff]
    %v84 = vld [vmem:[#allocation2 + $0x150] sm:$0xff]
    %v85 = vld [vmem:[#allocation2 + $0x158] sm:$0xff]
    %v86 = vld [vmem:[#allocation2 + $0x160] sm:$0xff]
    %v87 = vld [vmem:[#allocation2 + $0x168] sm:$0xff]
    %v88 = vld [vmem:[#allocation2 + $0x170] sm:$0xff]
    %v89 = vld [vmem:[#allocation2 + $0x178] sm:$0xff]
    %v90 = vld [vmem:[#allocation2 + $0x180] sm:$0xff]
    %v91 = vld [vmem:[#allocation2 + $0x188] sm:$0xff]
    %v92 = vld [vmem:[#allocation2 + $0x190] sm:$0xff]
    %v93 = vld [vmem:[#allocation2 + $0x198] sm:$0xff]
    %v94 = vld [vmem:[#allocation2 + $0x1a0] sm:$0xff]
    %v95 = vld [vmem:[#allocation2 + $0x1a8] sm:$0xff]
    %v96 = vld [vmem:[#allocation2 + $0x1b0] sm:$0xff]
    %v97 = vld [vmem:[#allocation2 + $0x1b8] sm:$0xff]
    %v98 = vld [vmem:[#allocation2 + $0x1c0] sm:$0xff]
    %v99 = vld [vmem:[#allocation2 + $0x1c8] sm:$0xff]
    %v100 = vld [vmem:[#allocation2 + $0x1d0] sm:$0xff]
    %v101 = vld [vmem:[#allocation2 + $0x1d8] sm:$0xff]
    %v102 = vld [vmem:[#allocation2 + $0x1e0] sm:$0xff]
    %v103 = vld [vmem:[#allocation2 + $0x1e8] sm:$0xff]
    %v104 = vld [vmem:[#allocation2 + $0x1f0] sm:$0xff]
    %v105 = vld [vmem:[#allocation2 + $0x1f8] sm:$0xff]
    %v106 = vld [vmem:[#allocation2 + $0x200] sm:$0xff]
    %v107 = vld [vmem:[#allocation2 + $0x208] sm:$0xff]
    %v108 = vld [vmem:[#allocation2 + $0x210] sm:$0xff]
    %v109 = vld [vmem:[#allocation2 + $0x218] sm:$0xff]
    %v110 = vld [vmem:[#allocation2 + $0x220] sm:$0xff]
    %v111 = vld [vmem:[#allocation2 + $0x228] sm:$0xff]
    %v112 = vld [vmem:[#allocation2 + $0x230] sm:$0xff]
    %v113 = vld [vmem:[#allocation2 + $0x238] sm:$0xff]
    %v114 = vld [vmem:[#allocation2 + $0x240] sm:$0xff]
    %v115 = vld [vmem:[#allocation2 + $0x248] sm:$0xff]
    %v116 = vld [vmem:[#allocation2 + $0x250] sm:$0xff]
    %v117 = vld [vmem:[#allocation2 + $0x258] sm:$0xff]
    %v118 = vld [vmem:[#allocation2 + $0x260] sm:$0xff]
    %v119 = vld [vmem:[#allocation2 + $0x268] sm:$0xff]
    %v120 = vld [vmem:[#allocation2 + $0x270] sm:$0xff]
    %v121 = vld [vmem:[#allocation2 + $0x278] sm:$0xff]
    %v122 = vld [vmem:[#allocation2 + $0x280] sm:$0xff]
    %v123 = vld [vmem:[#allocation2 + $0x288] sm:$0xff]
    %v124 = vld [vmem:[#allocation2 + $0x290] sm:$0xff]
    %v125 = vld [vmem:[#allocation2 + $0x298] sm:$0xff]
    %v126 = vld [vmem:[#allocation2 + $0x2a0] sm:$0xff]
    %v127 = vld [vmem:[#allocation2 + $0x2a8] sm:$0xff]
    %v128 = vld [vmem:[#allocation2 + $0x2b0] sm:$0xff]
    %v129 = vld [vmem:[#allocation2 + $0x2b8] sm:$0xff]
    %v130 = vld [vmem:[#allocation2 + $0x2c0] sm:$0xff]
    %v131 = vld [vmem:[#allocation2 + $0x2c8] sm:$0xff]
    %v132 = vld [vmem:[#allocation2 + $0x2d0] sm:$0xff]
    %v133 = vld [vmem:[#allocation2 + $0x2d8] sm:$0xff]
    %v134 = vld [vmem:[#allocation2 + $0x2e0] sm:$0xff]
    %v135 = vld [vmem:[#allocation2 + $0x2e8] sm:$0xff]
    %v136 = vld [vmem:[#allocation2 + $0x2f0] sm:$0xff]
    %v137 = vld [vmem:[#allocation2 + $0x2f8] sm:$0xff]
    %v138 = vld [vmem:[#allocation2 + $0x300] sm:$0xff]
    %v139 = vld [vmem:[#allocation2 + $0x308] sm:$0xff]
    %v140 = vld [vmem:[#allocation2 + $0x310] sm:$0xff]
    %v141 = vld [vmem:[#allocation2 + $0x318] sm:$0xff]
    %v142 = vld [vmem:[#allocation2 + $0x320] sm:$0xff]
    %v143 = vld [vmem:[#allocation2 + $0x328] sm:$0xff]
    %v144 = vld [vmem:[#allocation2 + $0x330] sm:$0xff]
    %v145 = vld [vmem:[#allocation2 + $0x338] sm:$0xff]
    %v146 = vld [vmem:[#allocation2 + $0x340] sm:$0xff]
    %v147 = vld [vmem:[#allocation2 + $0x348] sm:$0xff]
    %v148 = vld [vmem:[#allocation2 + $0x350] sm:$0xff]
    %v149 = vld [vmem:[#allocation2 + $0x358] sm:$0xff]
    %v150 = vld [vmem:[#allocation2 + $0x360] sm:$0xff]
    %v151 = vld [vmem:[#allocation2 + $0x368] sm:$0xff]
    %v152 = vld [vmem:[#allocation2 + $0x370] sm:$0xff]
    %v153 = vld [vmem:[#allocation2 + $0x378] sm:$0xff]
    %v154 = vld [vmem:[#allocation2 + $0x380] sm:$0xff]
    %v155 = vld [vmem:[#allocation2 + $0x388] sm:$0xff]
    %v156 = vld [vmem:[#allocation2 + $0x390] sm:$0xff]
    %v157 = vld [vmem:[#allocation2 + $0x398] sm:$0xff]
    %v158 = vld [vmem:[#allocation2 + $0x3a0] sm:$0xff]
    %v159 = vld [vmem:[#allocation2 + $0x3a8] sm:$0xff]
    %v160 = vld [vmem:[#allocation2 + $0x3b0] sm:$0xff]
    %v161 = vld [vmem:[#allocation2 + $0x3b8] sm:$0xff]
    %v162 = vld [vmem:[#allocation2 + $0x3c0] sm:$0xff]
    %v163 = vld [vmem:[#allocation2 + $0x3c8] sm:$0xff]
    %v164 = vld [vmem:[#allocation2 + $0x3d0] sm:$0xff]
    %v165 = vld [vmem:[#allocation2 + $0x3d8] sm:$0xff]
    %v166 = vld [vmem:[#allocation2 + $0x3e0] sm:$0xff]
    %v167 = vld [vmem:[#allocation2 + $0x3e8] sm:$0xff]
    %v168 = vld [vmem:[#allocation2 + $0x3f0] sm:$0xff]
    %v169 = vld [vmem:[#allocation2 + $0x3f8] sm:$0xff]
    %v170 = vmul.f32 %v42, %v42
    %v171 = vmul.f32 %v43, %v43
    %v172 = vmul.f32 %v44, %v44
    %v173 = vmul.f32 %v45, %v45
    %v174 = vmul.f32 %v46, %v46
    %v175 = vmul.f32 %v47, %v47
    %v176 = vmul.f32 %v48, %v48
    %v177 = vmul.f32 %v49, %v49
    %v178 = vmul.f32 %v50, %v50
    %v179 = vmul.f32 %v51, %v51
    %v180 = vmul.f32 %v52, %v52
    %v181 = vmul.f32 %v53, %v53
    %v182 = vmul.f32 %v54, %v54
    %v183 = vmul.f32 %v55, %v55
    %v184 = vmul.f32 %v56, %v56
    %v185 = vmul.f32 %v57, %v57
    %v186 = vmul.f32 %v58, %v58
    %v187 = vmul.f32 %v59, %v59
    %v188 = vmul.f32 %v60, %v60
    %v189 = vmul.f32 %v61, %v61
    %v190 = vmul.f32 %v62, %v62
    %v191 = vmul.f32 %v63, %v63
    %v192 = vmul.f32 %v64, %v64
    %v193 = vmul.f32 %v65, %v65
    %v194 = vmul.f32 %v66, %v66
    %v195 = vmul.f32 %v67, %v67
    %v196 = vmul.f32 %v68, %v68
    %v197 = vmul.f32 %v69, %v69
    %v198 = vmul.f32 %v70, %v70
    %v199 = vmul.f32 %v71, %v71
    %v200 = vmul.f32 %v72, %v72
    %v201 = vmul.f32 %v73, %v73
    %v202 = vmul.f32 %v74, %v74
    %v203 = vmul.f32 %v75, %v75
    %v204 = vmul.f32 %v76, %v76
    %v205 = vmul.f32 %v77, %v77
    %v206 = vmul.f32 %v78, %v78
    %v207 = vmul.f32 %v79, %v79
    %v208 = vmul.f32 %v80, %v80
    %v209 = vmul.f32 %v81, %v81
    %v210 = vmul.f32 %v82, %v82
    %v211 = vmul.f32 %v83, %v83
    %v212 = vmul.f32 %v84, %v84
    %v213 = vmul.f32 %v85, %v85
    %v214 = vmul.f32 %v86, %v86
    %v215 = vmul.f32 %v87, %v87
    %v216 = vmul.f32 %v88, %v88
    %v217 = vmul.f32 %v89, %v89
    %v218 = vmul.f32 %v90, %v90
    %v219 = vmul.f32 %v91, %v91
    %v220 = vmul.f32 %v92, %v92
    %v221 = vmul.f32 %v93, %v93
    %v222 = vmul.f32 %v94, %v94
    %v223 = vmul.f32 %v95, %v95
    %v224 = vmul.f32 %v96, %v96
    %v225 = vmul.f32 %v97, %v97
    %v226 = vmul.f32 %v98, %v98
    %v227 = vmul.f32 %v99, %v99
    %v228 = vmul.f32 %v100, %v100
    %v229 = vmul.f32 %v101, %v101
    %v230 = vmul.f32 %v102, %v102
    %v231 = vmul.f32 %v103, %v103
    %v232 = vmul.f32 %v104, %v104
    %v233 = vmul.f32 %v105, %v105
    %v234 = vmul.f32 %v106, %v106
    %v235 = vmul.f32 %v107, %v107
    %v236 = vmul.f32 %v108, %v108
    %v237 = vmul.f32 %v109, %v109
    %v238 = vmul.f32 %v110, %v110
    %v239 = vmul.f32 %v111, %v111
    %v240 = vmul.f32 %v112, %v112
    %v241 = vmul.f32 %v113, %v113
    %v242 = vmul.f32 %v114, %v114
    %v243 = vmul.f32 %v115, %v115
    %v244 = vmul.f32 %v116, %v116
    %v245 = vmul.f32 %v117, %v117
    %v246 = vmul.f32 %v118, %v118
    %v247 = vmul.f32 %v119, %v119
    %v248 = vmul.f32 %v120, %v120
    %v249 = vmul.f32 %v121, %v121
    %v250 = vmul.f32 %v122, %v122
    %v251 = vmul.f32 %v123, %v123
    %v252 = vmul.f32 %v124, %v124
    %v253 = vmul.f32 %v125, %v125
    %v254 = vmul.f32 %v126, %v126
    %v255 = vmul.f32 %v127, %v127
    %v256 = vmul.f32 %v128, %v128
    %v257 = vmul.f32 %v129, %v129
    %v258 = vmul.f32 %v130, %v130
    %v259 = vmul.f32 %v131, %v131
    %v260 = vmul.f32 %v132, %v132
    %v261 = vmul.f32 %v133, %v133
    %v262 = vmul.f32 %v134, %v134
    %v263 = vmul.f32 %v135, %v135
    %v264 = vmul.f32 %v136, %v136
    %v265 = vmul.f32 %v137, %v137
    %v266 = vmul.f32 %v138, %v138
    %v267 = vmul.f32 %v139, %v139
    %v268 = vmul.f32 %v140, %v140
    %v269 = vmul.f32 %v141, %v141
    %v270 = vmul.f32 %v142, %v142
    %v271 = vmul.f32 %v143, %v143
    %v272 = vmul.f32 %v144, %v144
    %v273 = vmul.f32 %v145, %v145
    %v274 = vmul.f32 %v146, %v146
    %v275 = vmul.f32 %v147, %v147
    %v276 = vmul.f32 %v148, %v148
    %v277 = vmul.f32 %v149, %v149
    %v278 = vmul.f32 %v150, %v150
    %v279 = vmul.f32 %v151, %v151
    %v280 = vmul.f32 %v152, %v152
    %v281 = vmul.f32 %v153, %v153
    %v282 = vmul.f32 %v154, %v154
    %v283 = vmul.f32 %v155, %v155
    %v284 = vmul.f32 %v156, %v156
    %v285 = vmul.f32 %v157, %v157
    %v286 = vmul.f32 %v158, %v158
    %v287 = vmul.f32 %v159, %v159
    %v288 = vmul.f32 %v160, %v160
    %v289 = vmul.f32 %v161, %v161
    %v290 = vmul.f32 %v162, %v162
    %v291 = vmul.f32 %v163, %v163
    %v292 = vmul.f32 %v164, %v164
    %v293 = vmul.f32 %v165, %v165
    %v294 = vmul.f32 %v166, %v166
    %v295 = vmul.f32 %v167, %v167
    %v296 = vmul.f32 %v168, %v168
    %v297 = vmul.f32 %v169, %v169
    %vm298 = vcmask 261120
    %v300 = vsel %vm298, %v35, 0
    %v303 = vsel %vm298, %v36, 0
    %v306 = vsel %vm298, %v42, 0
    %v309 = vsel %vm298, %v43, 0
    %v312 = vsel %vm298, %v44, 0
    %v315 = vsel %vm298, %v45, 0
    %v318 = vsel %vm298, %v46, 0
    %v321 = vsel %vm298, %v47, 0
    %v324 = vsel %vm298, %v48, 0
    %v327 = vsel %vm298, %v49, 0
    %v330 = vsel %vm298, %v50, 0
    %v333 = vsel %vm298, %v51, 0
    %v336 = vsel %vm298, %v52, 0
    %v339 = vsel %vm298, %v53, 0
    %v342 = vsel %vm298, %v54, 0
    %v345 = vsel %vm298, %v55, 0
    %v348 = vsel %vm298, %v56, 0
    %v351 = vsel %vm298, %v57, 0
    %v354 = vsel %vm298, %v58, 0
    %v357 = vsel %vm298, %v59, 0
    %v360 = vsel %vm298, %v60, 0
    %v363 = vsel %vm298, %v61, 0
    %v366 = vsel %vm298, %v62, 0
    %v369 = vsel %vm298, %v63, 0
    %v372 = vsel %vm298, %v64, 0
    %v375 = vsel %vm298, %v65, 0
    %v378 = vsel %vm298, %v66, 0
    %v381 = vsel %vm298, %v67, 0
    %v384 = vsel %vm298, %v68, 0
    %v387 = vsel %vm298, %v69, 0
    %v390 = vsel %vm298, %v70, 0
    %v393 = vsel %vm298, %v71, 0
    %v396 = vsel %vm298, %v72, 0
    %v399 = vsel %vm298, %v73, 0
    %v402 = vsel %vm298, %v74, 0
    %v405 = vsel %vm298, %v75, 0
    %v408 = vsel %vm298, %v76, 0
    %v411 = vsel %vm298, %v77, 0
    %v414 = vsel %vm298, %v78, 0
    %v417 = vsel %vm298, %v79, 0
    %v420 = vsel %vm298, %v80, 0
    %v423 = vsel %vm298, %v81, 0
    %v426 = vsel %vm298, %v82, 0
    %v429 = vsel %vm298, %v83, 0
    %v432 = vsel %vm298, %v84, 0
    %v435 = vsel %vm298, %v85, 0
    %v438 = vsel %vm298, %v86, 0
    %v441 = vsel %vm298, %v87, 0
    %v444 = vsel %vm298, %v88, 0
    %v447 = vsel %vm298, %v89, 0
    %v450 = vsel %vm298, %v90, 0
    %v453 = vsel %vm298, %v91, 0
    %v456 = vsel %vm298, %v92, 0
    %v459 = vsel %vm298, %v93, 0
    %v462 = vsel %vm298, %v94, 0
    %v465 = vsel %vm298, %v95, 0
    %v468 = vsel %vm298, %v96, 0
    %v471 = vsel %vm298, %v97, 0
    %v474 = vsel %vm298, %v98, 0
    %v477 = vsel %vm298, %v99, 0
    %v480 = vsel %vm298, %v100, 0
    %v483 = vsel %vm298, %v101, 0
    %v486 = vsel %vm298, %v102, 0
    %v489 = vsel %vm298, %v103, 0
    %v492 = vsel %vm298, %v104, 0
    %v495 = vsel %vm298, %v105, 0
    %v498 = vsel %vm298, %v106, 0
    %v501 = vsel %vm298, %v107, 0
    %v504 = vsel %vm298, %v108, 0
    %v507 = vsel %vm298, %v109, 0
    %v510 = vsel %vm298, %v110, 0
    %v513 = vsel %vm298, %v111, 0
    %v516 = vsel %vm298, %v112, 0
    %v519 = vsel %vm298, %v113, 0
    %v522 = vsel %vm298, %v114, 0
    %v525 = vsel %vm298, %v115, 0
    %v528 = vsel %vm298, %v116, 0
    %v531 = vsel %vm298, %v117, 0
    %v534 = vsel %vm298, %v118, 0
    %v537 = vsel %vm298, %v119, 0
    %v540 = vsel %vm298, %v120, 0
    %v543 = vsel %vm298, %v121, 0
    %v546 = vsel %vm298, %v122, 0
    %v549 = vsel %vm298, %v123, 0
    %v552 = vsel %vm298, %v124, 0
    %v555 = vsel %vm298, %v125, 0
    %v558 = vsel %vm298, %v126, 0
    %v561 = vsel %vm298, %v127, 0
    %v564 = vsel %vm298, %v128, 0
    %v567 = vsel %vm298, %v129, 0
    %v570 = vsel %vm298, %v130, 0
    %v573 = vsel %vm298, %v131, 0
    %v576 = vsel %vm298, %v132, 0
    %v579 = vsel %vm298, %v133, 0
    %v582 = vsel %vm298, %v134, 0
    %v585 = vsel %vm298, %v135, 0
    %v588 = vsel %vm298, %v136, 0
    %v591 = vsel %vm298, %v137, 0
    %v594 = vsel %vm298, %v138, 0
    %v597 = vsel %vm298, %v139, 0
    %v600 = vsel %vm298, %v140, 0
    %v603 = vsel %vm298, %v141, 0
    %v606 = vsel %vm298, %v142, 0
    %v609 = vsel %vm298, %v143, 0
    %v612 = vsel %vm298, %v144, 0
    %v615 = vsel %vm298, %v145, 0
    %v618 = vsel %vm298, %v146, 0
    %v621 = vsel %vm298, %v147, 0
    %v624 = vsel %vm298, %v148, 0
    %v627 = vsel %vm298, %v149, 0
    %v630 = vsel %vm298, %v150, 0
    %v633 = vsel %vm298, %v151, 0
    %v636 = vsel %vm298, %v152, 0
    %v639 = vsel %vm298, %v153, 0
    %v642 = vsel %vm298, %v154, 0
    %v645 = vsel %vm298, %v155, 0
    %v648 = vsel %vm298, %v156, 0
    %v651 = vsel %vm298, %v157, 0
    %v654 = vsel %vm298, %v158, 0
    %v657 = vsel %vm298, %v159, 0
    %v660 = vsel %vm298, %v160, 0
    %v663 = vsel %vm298, %v161, 0
    %v666 = vsel %vm298, %v162, 0
    %v669 = vsel %vm298, %v163, 0
    %v672 = vsel %vm298, %v164, 0
    %v675 = vsel %vm298, %v165, 0
    %v678 = vsel %vm298, %v166, 0
    %v681 = vsel %vm298, %v167, 0
    %v684 = vsel %vm298, %v168, 0
    %v687 = vsel %vm298, %v169, 0
    %689 = vmatprep.subr.mxu0 0.0
    %690 = vmatpush1.xpose.msra.mxu0 %v306
    %691 = vmatprep.subr.mxu0 0.0
    %692 = vmatpush1.xpose.msra.mxu0 %v309
    %693 = vmatprep.subr.mxu0 0.0
    %694 = vmatpush1.xpose.msra.mxu0 %v312
    %695 = vmatprep.subr.mxu0 0.0
    %696 = vmatpush1.xpose.msra.mxu0 %v315
    %697 = vmatprep.subr.mxu0 0.0
    %698 = vmatpush1.xpose.msra.mxu0 %v318
    %699 = vmatprep.subr.mxu0 0.0
    %700 = vmatpush1.xpose.msra.mxu0 %v321
    %701 = vmatprep.subr.mxu0 0.0
    %702 = vmatpush1.xpose.msra.mxu0 %v324
    %703 = vmatprep.subr.mxu0 0.0
    %704 = vmatpush1.xpose.msra.mxu0 %v327
    %705 = vmatprep.subr.mxu0 0.0
    %706 = vmatpush1.xpose.msra.mxu0 %v330
    %707 = vmatprep.subr.mxu0 0.0
    %708 = vmatpush1.xpose.msra.mxu0 %v333
    %709 = vmatprep.subr.mxu0 0.0
    %710 = vmatpush1.xpose.msra.mxu0 %v336
    %711 = vmatprep.subr.mxu0 0.0
    %712 = vmatpush1.xpose.msra.mxu0 %v339
    %713 = vmatprep.subr.mxu0 0.0
    %714 = vmatpush1.xpose.msra.mxu0 %v342
    %715 = vmatprep.subr.mxu0 0.0
    %716 = vmatpush1.xpose.msra.mxu0 %v345
    %717 = vmatprep.subr.mxu0 0.0
    %718 = vmatpush1.xpose.msra.mxu0 %v348
    %719 = vmatprep.subr.mxu0 0.0
    %720 = vmatpush1.xpose.msra.mxu0 %v351
    %721 = vmatprep.subr.mxu0 0.0
    %722 = vmatpush1.xpose.msra.mxu0 %v354
    %723 = vmatprep.subr.mxu0 0.0
    %724 = vmatpush1.xpose.msra.mxu0 %v357
    %725 = vmatprep.subr.mxu0 0.0
    %726 = vmatpush1.xpose.msra.mxu0 %v360
    %727 = vmatprep.subr.mxu0 0.0
    %728 = vmatpush1.xpose.msra.mxu0 %v363
    %729 = vmatprep.subr.mxu0 0.0
    %730 = vmatpush1.xpose.msra.mxu0 %v366
    %731 = vmatprep.subr.mxu0 0.0
    %732 = vmatpush1.xpose.msra.mxu0 %v369
    %733 = vmatprep.subr.mxu0 0.0
    %734 = vmatpush1.xpose.msra.mxu0 %v372
    %735 = vmatprep.subr.mxu0 0.0
    %736 = vmatpush1.xpose.msra.mxu0 %v375
    %737 = vmatprep.subr.mxu0 0.0
    %738 = vmatpush1.xpose.msra.mxu0 %v378
    %739 = vmatprep.subr.mxu0 0.0
    %740 = vmatpush1.xpose.msra.mxu0 %v381
    %741 = vmatprep.subr.mxu0 0.0
    %742 = vmatpush1.xpose.msra.mxu0 %v384
    %743 = vmatprep.subr.mxu0 0.0
    %744 = vmatpush1.xpose.msra.mxu0 %v387
    %745 = vmatprep.subr.mxu0 0.0
    %746 = vmatpush1.xpose.msra.mxu0 %v390
    %747 = vmatprep.subr.mxu0 0.0
    %748 = vmatpush1.xpose.msra.mxu0 %v393
    %749 = vmatprep.subr.mxu0 0.0
    %750 = vmatpush1.xpose.msra.mxu0 %v396
    %751 = vmatprep.subr.mxu0 0.0
    %752 = vmatpush1.xpose.msra.mxu0 %v399
    %753 = vmatprep.mubr.f32.mxu0 0.0
    %754 = vmatmul.mubr.f32.gmra.mrb[0].mxu0 %v300
    %v755 = vpop.f32.mrb[0].mxu0
    %v756 = vadd.f32 0.0, %v755
    %v757 = vpop.f32.mrb[0].mxu0
    %v758 = vadd.f32 0.0, %v757
    %759 = vmatprep.mubr.f32.mxu0 0.0
    %760 = vmatmul.mubr.f32.gmra.mrb[0].mxu0 %v303
    %v761 = vpop.f32.mrb[0].mxu0
    %v762 = vadd.f32 0.0, %v761
    %v763 = vpop.f32.mrb[0].mxu0
    %v764 = vadd.f32 0.0, %v763
    %765 = vdwg.mxu0
    %766 = vmatprep.subr.mxu0 0.0
    %767 = vmatpush1.xpose.msra.mxu0 %v402
    %768 = vmatprep.subr.mxu0 0.0
    %769 = vmatpush1.xpose.msra.mxu0 %v405
    %770 = vmatprep.subr.mxu0 0.0
    %771 = vmatpush1.xpose.msra.mxu0 %v408
    %772 = vmatprep.subr.mxu0 0.0
    %773 = vmatpush1.xpose.msra.mxu0 %v411
    %774 = vmatprep.subr.mxu0 0.0
    %775 = vmatpush1.xpose.msra.mxu0 %v414
    %776 = vmatprep.subr.mxu0 0.0
    %777 = vmatpush1.xpose.msra.mxu0 %v417
    %778 = vmatprep.subr.mxu0 0.0
    %779 = vmatpush1.xpose.msra.mxu0 %v420
    %780 = vmatprep.subr.mxu0 0.0
    %781 = vmatpush1.xpose.msra.mxu0 %v423
    %782 = vmatprep.subr.mxu0 0.0
    %783 = vmatpush1.xpose.msra.mxu0 %v426
    %784 = vmatprep.subr.mxu0 0.0
    %785 = vmatpush1.xpose.msra.mxu0 %v429
    %786 = vmatprep.subr.mxu0 0.0
    %787 = vmatpush1.xpose.msra.mxu0 %v432
    %788 = vmatprep.subr.mxu0 0.0
    %789 = vmatpush1.xpose.msra.mxu0 %v435
    %790 = vmatprep.subr.mxu0 0.0
    %791 = vmatpush1.xpose.msra.mxu0 %v438
    %792 = vmatprep.subr.mxu0 0.0
    %793 = vmatpush1.xpose.msra.mxu0 %v441
    %794 = vmatprep.subr.mxu0 0.0
    %795 = vmatpush1.xpose.msra.mxu0 %v444
    %796 = vmatprep.subr.mxu0 0.0
    %797 = vmatpush1.xpose.msra.mxu0 %v447
    %798 = vmatprep.subr.mxu0 0.0
    %799 = vmatpush1.xpose.msra.mxu0 %v450
    %800 = vmatprep.subr.mxu0 0.0
    %801 = vmatpush1.xpose.msra.mxu0 %v453
    %802 = vmatprep.subr.mxu0 0.0
    %803 = vmatpush1.xpose.msra.mxu0 %v456
    %804 = vmatprep.subr.mxu0 0.0
    %805 = vmatpush1.xpose.msra.mxu0 %v459
    %806 = vmatprep.subr.mxu0 0.0
    %807 = vmatpush1.xpose.msra.mxu0 %v462
    %808 = vmatprep.subr.mxu0 0.0
    %809 = vmatpush1.xpose.msra.mxu0 %v465
    %810 = vmatprep.subr.mxu0 0.0
    %811 = vmatpush1.xpose.msra.mxu0 %v468
    %812 = vmatprep.subr.mxu0 0.0
    %813 = vmatpush1.xpose.msra.mxu0 %v471
    %814 = vmatprep.subr.mxu0 0.0
    %815 = vmatpush1.xpose.msra.mxu0 %v474
    %816 = vmatprep.subr.mxu0 0.0
    %817 = vmatpush1.xpose.msra.mxu0 %v477
    %818 = vmatprep.subr.mxu0 0.0
    %819 = vmatpush1.xpose.msra.mxu0 %v480
    %820 = vmatprep.subr.mxu0 0.0
    %821 = vmatpush1.xpose.msra.mxu0 %v483
    %822 = vmatprep.subr.mxu0 0.0
    %823 = vmatpush1.xpose.msra.mxu0 %v486
    %824 = vmatprep.subr.mxu0 0.0
    %825 = vmatpush1.xpose.msra.mxu0 %v489
    %826 = vmatprep.subr.mxu0 0.0
    %827 = vmatpush1.xpose.msra.mxu0 %v492
    %828 = vmatprep.subr.mxu0 0.0
    %829 = vmatpush1.xpose.msra.mxu0 %v495
    %830 = vmatprep.mubr.f32.mxu0 0.0
    %831 = vmatmul.mubr.f32.gmra.mrb[0].mxu0 %v300
    %v832 = vpop.f32.mrb[0].mxu0
    %v833 = vadd.f32 0.0, %v832
    %v834 = vpop.f32.mrb[0].mxu0
    %v835 = vadd.f32 0.0, %v834
    %836 = vmatprep.mubr.f32.mxu0 0.0
    %837 = vmatmul.mubr.f32.gmra.mrb[0].mxu0 %v303
    %v838 = vpop.f32.mrb[0].mxu0
    %v839 = vadd.f32 0.0, %v838
    %v840 = vpop.f32.mrb[0].mxu0
    %v841 = vadd.f32 0.0, %v840
    %842 = vdwg.mxu0
    %843 = vmatprep.subr.mxu0 0.0
    %844 = vmatpush1.xpose.msra.mxu0 %v498
    %845 = vmatprep.subr.mxu0 0.0
    %846 = vmatpush1.xpose.msra.mxu0 %v501
    %847 = vmatprep.subr.mxu0 0.0
    %848 = vmatpush1.xpose.msra.mxu0 %v504
    %849 = vmatprep.subr.mxu0 0.0
    %850 = vmatpush1.xpose.msra.mxu0 %v507
    %851 = vmatprep.subr.mxu0 0.0
    %852 = vmatpush1.xpose.msra.mxu0 %v510
    %853 = vmatprep.subr.mxu0 0.0
    %854 = vmatpush1.xpose.msra.mxu0 %v513
    %855 = vmatprep.subr.mxu0 0.0
    %856 = vmatpush1.xpose.msra.mxu0 %v516
    %857 = vmatprep.subr.mxu0 0.0
    %858 = vmatpush1.xpose.msra.mxu0 %v519
    %859 = vmatprep.subr.mxu0 0.0
    %860 = vmatpush1.xpose.msra.mxu0 %v522
    %861 = vmatprep.subr.mxu0 0.0
    %862 = vmatpush1.xpose.msra.mxu0 %v525
    %863 = vmatprep.subr.mxu0 0.0
    %864 = vmatpush1.xpose.msra.mxu0 %v528
    %865 = vmatprep.subr.mxu0 0.0
    %866 = vmatpush1.xpose.msra.mxu0 %v531
    %867 = vmatprep.subr.mxu0 0.0
    %868 = vmatpush1.xpose.msra.mxu0 %v534
    %869 = vmatprep.subr.mxu0 0.0
    %870 = vmatpush1.xpose.msra.mxu0 %v537
    %871 = vmatprep.subr.mxu0 0.0
    %872 = vmatpush1.xpose.msra.mxu0 %v540
    %873 = vmatprep.subr.mxu0 0.0
    %874 = vmatpush1.xpose.msra.mxu0 %v543
    %875 = vmatprep.subr.mxu0 0.0
    %876 = vmatpush1.xpose.msra.mxu0 %v546
    %877 = vmatprep.subr.mxu0 0.0
    %878 = vmatpush1.xpose.msra.mxu0 %v549
    %879 = vmatprep.subr.mxu0 0.0
    %880 = vmatpush1.xpose.msra.mxu0 %v552
    %881 = vmatprep.subr.mxu0 0.0
    %882 = vmatpush1.xpose.msra.mxu0 %v555
    %883 = vmatprep.subr.mxu0 0.0
    %884 = vmatpush1.xpose.msra.mxu0 %v558
    %885 = vmatprep.subr.mxu0 0.0
    %886 = vmatpush1.xpose.msra.mxu0 %v561
    %887 = vmatprep.subr.mxu0 0.0
    %888 = vmatpush1.xpose.msra.mxu0 %v564
    %889 = vmatprep.subr.mxu0 0.0
    %890 = vmatpush1.xpose.msra.mxu0 %v567
    %891 = vmatprep.subr.mxu0 0.0
    %892 = vmatpush1.xpose.msra.mxu0 %v570
    %893 = vmatprep.subr.mxu0 0.0
    %894 = vmatpush1.xpose.msra.mxu0 %v573
    %895 = vmatprep.subr.mxu0 0.0
    %896 = vmatpush1.xpose.msra.mxu0 %v576
    %897 = vmatprep.subr.mxu0 0.0
    %898 = vmatpush1.xpose.msra.mxu0 %v579
    %899 = vmatprep.subr.mxu0 0.0
    %900 = vmatpush1.xpose.msra.mxu0 %v582
    %901 = vmatprep.subr.mxu0 0.0
    %902 = vmatpush1.xpose.msra.mxu0 %v585
    %903 = vmatprep.subr.mxu0 0.0
    %904 = vmatpush1.xpose.msra.mxu0 %v588
    %905 = vmatprep.subr.mxu0 0.0
    %906 = vmatpush1.xpose.msra.mxu0 %v591
    %907 = vmatprep.mubr.f32.mxu0 0.0
    %908 = vmatmul.mubr.f32.gmra.mrb[0].mxu0 %v300
    %v909 = vpop.f32.mrb[0].mxu0
    %v910 = vadd.f32 0.0, %v909
    %v911 = vpop.f32.mrb[0].mxu0
    %v912 = vadd.f32 0.0, %v911
    %913 = vmatprep.mubr.f32.mxu0 0.0
    %914 = vmatmul.mubr.f32.gmra.mrb[0].mxu0 %v303
    %v915 = vpop.f32.mrb[0].mxu0
    %v916 = vadd.f32 0.0, %v915
    %v917 = vpop.f32.mrb[0].mxu0
    %v918 = vadd.f32 0.0, %v917
    %919 = vdwg.mxu0
    %920 = vmatprep.subr.mxu0 0.0
    %921 = vmatpush1.xpose.msra.mxu0 %v594
    %922 = vmatprep.subr.mxu0 0.0
    %923 = vmatpush1.xpose.msra.mxu0 %v597
    %924 = vmatprep.subr.mxu0 0.0
    %925 = vmatpush1.xpose.msra.mxu0 %v600
    %926 = vmatprep.subr.mxu0 0.0
    %927 = vmatpush1.xpose.msra.mxu0 %v603
    %928 = vmatprep.subr.mxu0 0.0
    %929 = vmatpush1.xpose.msra.mxu0 %v606
    %930 = vmatprep.subr.mxu0 0.0
    %931 = vmatpush1.xpose.msra.mxu0 %v609
    %932 = vmatprep.subr.mxu0 0.0
    %933 = vmatpush1.xpose.msra.mxu0 %v612
    %934 = vmatprep.subr.mxu0 0.0
    %935 = vmatpush1.xpose.msra.mxu0 %v615
    %936 = vmatprep.subr.mxu0 0.0
    %937 = vmatpush1.xpose.msra.mxu0 %v618
    %938 = vmatprep.subr.mxu0 0.0
    %939 = vmatpush1.xpose.msra.mxu0 %v621
    %940 = vmatprep.subr.mxu0 0.0
    %941 = vmatpush1.xpose.msra.mxu0 %v624
    %942 = vmatprep.subr.mxu0 0.0
    %943 = vmatpush1.xpose.msra.mxu0 %v627
    %944 = vmatprep.subr.mxu0 0.0
    %945 = vmatpush1.xpose.msra.mxu0 %v630
    %946 = vmatprep.subr.mxu0 0.0
    %947 = vmatpush1.xpose.msra.mxu0 %v633
    %948 = vmatprep.subr.mxu0 0.0
    %949 = vmatpush1.xpose.msra.mxu0 %v636
    %950 = vmatprep.subr.mxu0 0.0
    %951 = vmatpush1.xpose.msra.mxu0 %v639
    %952 = vmatprep.subr.mxu0 0.0
    %953 = vmatpush1.xpose.msra.mxu0 %v642
    %954 = vmatprep.subr.mxu0 0.0
    %955 = vmatpush1.xpose.msra.mxu0 %v645
    %956 = vmatprep.subr.mxu0 0.0
    %957 = vmatpush1.xpose.msra.mxu0 %v648
    %958 = vmatprep.subr.mxu0 0.0
    %959 = vmatpush1.xpose.msra.mxu0 %v651
    %960 = vmatprep.subr.mxu0 0.0
    %961 = vmatpush1.xpose.msra.mxu0 %v654
    %962 = vmatprep.subr.mxu0 0.0
    %963 = vmatpush1.xpose.msra.mxu0 %v657
    %964 = vmatprep.subr.mxu0 0.0
    %965 = vmatpush1.xpose.msra.mxu0 %v660
    %966 = vmatprep.subr.mxu0 0.0
    %967 = vmatpush1.xpose.msra.mxu0 %v663
    %968 = vmatprep.subr.mxu0 0.0
    %969 = vmatpush1.xpose.msra.mxu0 %v666
    %970 = vmatprep.subr.mxu0 0.0
    %971 = vmatpush1.xpose.msra.mxu0 %v669
    %972 = vmatprep.subr.mxu0 0.0
    %973 = vmatpush1.xpose.msra.mxu0 %v672
    %974 = vmatprep.subr.mxu0 0.0
    %975 = vmatpush1.xpose.msra.mxu0 %v675
    %976 = vmatprep.subr.mxu0 0.0
    %977 = vmatpush1.xpose.msra.mxu0 %v678
    %978 = vmatprep.subr.mxu0 0.0
    %979 = vmatpush1.xpose.msra.mxu0 %v681
    %980 = vmatprep.subr.mxu0 0.0
    %981 = vmatpush1.xpose.msra.mxu0 %v684
    %982 = vmatprep.subr.mxu0 0.0
    %983 = vmatpush1.xpose.msra.mxu0 %v687
    %984 = vmatprep.mubr.f32.mxu0 0.0
    %985 = vmatmul.mubr.f32.gmra.mrb[0].mxu0 %v300
    %v986 = vpop.f32.mrb[0].mxu0
    %v987 = vadd.f32 0.0, %v986
    %v988 = vpop.f32.mrb[0].mxu0
    %v989 = vadd.f32 0.0, %v988
    %990 = vmatprep.mubr.f32.mxu0 0.0
    %991 = vmatmul.mubr.f32.gmra.mrb[0].mxu0 %v303
    %v992 = vpop.f32.mrb[0].mxu0
    %v993 = vadd.f32 0.0, %v992
    %v994 = vpop.f32.mrb[0].mxu0
    %v995 = vadd.f32 0.0, %v994
    %996 = vdwg.mxu0
    %v998 = vsel %vm298, %v170, 0
    %v1001 = vsel %vm298, %v171, 0
    %v1004 = vsel %vm298, %v172, 0
    %v1007 = vsel %vm298, %v173, 0
    %v1010 = vsel %vm298, %v174, 0
    %v1013 = vsel %vm298, %v175, 0
    %v1016 = vsel %vm298, %v176, 0
    %v1019 = vsel %vm298, %v177, 0
    %v1022 = vsel %vm298, %v178, 0
    %v1025 = vsel %vm298, %v179, 0
    %v1028 = vsel %vm298, %v180, 0
    %v1031 = vsel %vm298, %v181, 0
    %v1034 = vsel %vm298, %v182, 0
    %v1037 = vsel %vm298, %v183, 0
    %v1040 = vsel %vm298, %v184, 0
    %v1043 = vsel %vm298, %v185, 0
    %v1046 = vsel %vm298, %v186, 0
    %v1049 = vsel %vm298, %v187, 0
    %v1052 = vsel %vm298, %v188, 0
    %v1055 = vsel %vm298, %v189, 0
    %v1058 = vsel %vm298, %v190, 0
    %v1061 = vsel %vm298, %v191, 0
    %v1064 = vsel %vm298, %v192, 0
    %v1067 = vsel %vm298, %v193, 0
    %v1070 = vsel %vm298, %v194, 0
    %v1073 = vsel %vm298, %v195, 0
    %v1076 = vsel %vm298, %v196, 0
    %v1079 = vsel %vm298, %v197, 0
    %v1082 = vsel %vm298, %v198, 0
    %v1085 = vsel %vm298, %v199, 0
    %v1088 = vsel %vm298, %v200, 0
    %v1091 = vsel %vm298, %v201, 0
    %v1094 = vsel %vm298, %v202, 0
    %v1097 = vsel %vm298, %v203, 0
    %v1100 = vsel %vm298, %v204, 0
    %v1103 = vsel %vm298, %v205, 0
    %v1106 = vsel %vm298, %v206, 0
    %v1109 = vsel %vm298, %v207, 0
    %v1112 = vsel %vm298, %v208, 0
    %v1115 = vsel %vm298, %v209, 0
    %v1118 = vsel %vm298, %v210, 0
    %v1121 = vsel %vm298, %v211, 0
    %v1124 = vsel %vm298, %v212, 0
    %v1127 = vsel %vm298, %v213, 0
    %v1130 = vsel %vm298, %v214, 0
    %v1133 = vsel %vm298, %v215, 0
    %v1136 = vsel %vm298, %v216, 0
    %v1139 = vsel %vm298, %v217, 0
    %v1142 = vsel %vm298, %v218, 0
    %v1145 = vsel %vm298, %v219, 0
    %v1148 = vsel %vm298, %v220, 0
    %v1151 = vsel %vm298, %v221, 0
    %v1154 = vsel %vm298, %v222, 0
    %v1157 = vsel %vm298, %v223, 0
    %v1160 = vsel %vm298, %v224, 0
    %v1163 = vsel %vm298, %v225, 0
    %v1166 = vsel %vm298, %v226, 0
    %v1169 = vsel %vm298, %v227, 0
    %v1172 = vsel %vm298, %v228, 0
    %v1175 = vsel %vm298, %v229, 0
    %v1178 = vsel %vm298, %v230, 0
    %v1181 = vsel %vm298, %v231, 0
    %v1184 = vsel %vm298, %v232, 0
    %v1187 = vsel %vm298, %v233, 0
    %v1190 = vsel %vm298, %v234, 0
    %v1193 = vsel %vm298, %v235, 0
    %v1196 = vsel %vm298, %v236, 0
    %v1199 = vsel %vm298, %v237, 0
    %v1202 = vsel %vm298, %v238, 0
    %v1205 = vsel %vm298, %v239, 0
    %v1208 = vsel %vm298, %v240, 0
    %v1211 = vsel %vm298, %v241, 0
    %v1214 = vsel %vm298, %v242, 0
    %v1217 = vsel %vm298, %v243, 0
    %v1220 = vsel %vm298, %v244, 0
    %v1223 = vsel %vm298, %v245, 0
    %v1226 = vsel %vm298, %v246, 0
    %v1229 = vsel %vm298, %v247, 0
    %v1232 = vsel %vm298, %v248, 0
    %v1235 = vsel %vm298, %v249, 0
    %v1238 = vsel %vm298, %v250, 0
    %v1241 = vsel %vm298, %v251, 0
    %v1244 = vsel %vm298, %v252, 0
    %v1247 = vsel %vm298, %v253, 0
    %v1250 = vsel %vm298, %v254, 0
    %v1253 = vsel %vm298, %v255, 0
    %v1256 = vsel %vm298, %v256, 0
    %v1259 = vsel %vm298, %v257, 0
    %v1262 = vsel %vm298, %v258, 0
    %v1265 = vsel %vm298, %v259, 0
    %v1268 = vsel %vm298, %v260, 0
    %v1271 = vsel %vm298, %v261, 0
    %v1274 = vsel %vm298, %v262, 0
    %v1277 = vsel %vm298, %v263, 0
    %v1280 = vsel %vm298, %v264, 0
    %v1283 = vsel %vm298, %v265, 0
    %v1286 = vsel %vm298, %v266, 0
    %v1289 = vsel %vm298, %v267, 0
    %v1292 = vsel %vm298, %v268, 0
    %v1295 = vsel %vm298, %v269, 0
    %v1298 = vsel %vm298, %v270, 0
    %v1301 = vsel %vm298, %v271, 0
    %v1304 = vsel %vm298, %v272, 0
    %v1307 = vsel %vm298, %v273, 0
    %v1310 = vsel %vm298, %v274, 0
    %v1313 = vsel %vm298, %v275, 0
    %v1316 = vsel %vm298, %v276, 0
    %v1319 = vsel %vm298, %v277, 0
    %v1322 = vsel %vm298, %v278, 0
    %v1325 = vsel %vm298, %v279, 0
    %v1328 = vsel %vm298, %v280, 0
    %v1331 = vsel %vm298, %v281, 0
    %v1334 = vsel %vm298, %v282, 0
    %v1337 = vsel %vm298, %v283, 0
    %v1340 = vsel %vm298, %v284, 0
    %v1343 = vsel %vm298, %v285, 0
    %v1346 = vsel %vm298, %v286, 0
    %v1349 = vsel %vm298, %v287, 0
    %v1352 = vsel %vm298, %v288, 0
    %v1355 = vsel %vm298, %v289, 0
    %v1358 = vsel %vm298, %v290, 0
    %v1361 = vsel %vm298, %v291, 0
    %v1364 = vsel %vm298, %v292, 0
    %v1367 = vsel %vm298, %v293, 0
    %v1370 = vsel %vm298, %v294, 0
    %v1373 = vsel %vm298, %v295, 0
    %v1376 = vsel %vm298, %v296, 0
    %v1379 = vsel %vm298, %v297, 0
    %1381 = vmatprep.subr.mxu0 0.0
    %1382 = vmatpush1.xpose.msra.mxu0 %v998
    %1383 = vmatprep.subr.mxu0 0.0
    %1384 = vmatpush1.xpose.msra.mxu0 %v1001
    %1385 = vmatprep.subr.mxu0 0.0
    %1386 = vmatpush1.xpose.msra.mxu0 %v1004
    %1387 = vmatprep.subr.mxu0 0.0
    %1388 = vmatpush1.xpose.msra.mxu0 %v1007
    %1389 = vmatprep.subr.mxu0 0.0
    %1390 = vmatpush1.xpose.msra.mxu0 %v1010
    %1391 = vmatprep.subr.mxu0 0.0
    %1392 = vmatpush1.xpose.msra.mxu0 %v1013
    %1393 = vmatprep.subr.mxu0 0.0
    %1394 = vmatpush1.xpose.msra.mxu0 %v1016
    %1395 = vmatprep.subr.mxu0 0.0
    %1396 = vmatpush1.xpose.msra.mxu0 %v1019
    %1397 = vmatprep.subr.mxu0 0.0
    %1398 = vmatpush1.xpose.msra.mxu0 %v1022
    %1399 = vmatprep.subr.mxu0 0.0
    %1400 = vmatpush1.xpose.msra.mxu0 %v1025
    %1401 = vmatprep.subr.mxu0 0.0
    %1402 = vmatpush1.xpose.msra.mxu0 %v1028
    %1403 = vmatprep.subr.mxu0 0.0
    %1404 = vmatpush1.xpose.msra.mxu0 %v1031
    %1405 = vmatprep.subr.mxu0 0.0
    %1406 = vmatpush1.xpose.msra.mxu0 %v1034
    %1407 = vmatprep.subr.mxu0 0.0
    %1408 = vmatpush1.xpose.msra.mxu0 %v1037
    %1409 = vmatprep.subr.mxu0 0.0
    %1410 = vmatpush1.xpose.msra.mxu0 %v1040
    %1411 = vmatprep.subr.mxu0 0.0
    %1412 = vmatpush1.xpose.msra.mxu0 %v1043
    %1413 = vmatprep.subr.mxu0 0.0
    %1414 = vmatpush1.xpose.msra.mxu0 %v1046
    %1415 = vmatprep.subr.mxu0 0.0
    %1416 = vmatpush1.xpose.msra.mxu0 %v1049
    %1417 = vmatprep.subr.mxu0 0.0
    %1418 = vmatpush1.xpose.msra.mxu0 %v1052
    %1419 = vmatprep.subr.mxu0 0.0
    %1420 = vmatpush1.xpose.msra.mxu0 %v1055
    %1421 = vmatprep.subr.mxu0 0.0
    %1422 = vmatpush1.xpose.msra.mxu0 %v1058
    %1423 = vmatprep.subr.mxu0 0.0
    %1424 = vmatpush1.xpose.msra.mxu0 %v1061
    %1425 = vmatprep.subr.mxu0 0.0
    %1426 = vmatpush1.xpose.msra.mxu0 %v1064
    %1427 = vmatprep.subr.mxu0 0.0
    %1428 = vmatpush1.xpose.msra.mxu0 %v1067
    %1429 = vmatprep.subr.mxu0 0.0
    %1430 = vmatpush1.xpose.msra.mxu0 %v1070
    %1431 = vmatprep.subr.mxu0 0.0
    %1432 = vmatpush1.xpose.msra.mxu0 %v1073
    %1433 = vmatprep.subr.mxu0 0.0
    %1434 = vmatpush1.xpose.msra.mxu0 %v1076
    %1435 = vmatprep.subr.mxu0 0.0
    %1436 = vmatpush1.xpose.msra.mxu0 %v1079
    %1437 = vmatprep.subr.mxu0 0.0
    %1438 = vmatpush1.xpose.msra.mxu0 %v1082
    %1439 = vmatprep.subr.mxu0 0.0
    %1440 = vmatpush1.xpose.msra.mxu0 %v1085
    %1441 = vmatprep.subr.mxu0 0.0
    %1442 = vmatpush1.xpose.msra.mxu0 %v1088
    %1443 = vmatprep.subr.mxu0 0.0
    %1444 = vmatpush1.xpose.msra.mxu0 %v1091
    %1445 = vmatprep.mubr.f32.mxu0 0.0
    %1446 = vmatmul.mubr.f32.gmra.mrb[0].mxu0 %v303
    %v1447 = vpop.f32.mrb[0].mxu0
    %v1448 = vadd.f32 0.0, %v1447
    %v1449 = vpop.f32.mrb[0].mxu0
    %v1450 = vadd.f32 0.0, %v1449
    %1451 = vdwg.mxu0
    %1452 = vmatprep.subr.mxu0 0.0
    %1453 = vmatpush1.xpose.msra.mxu0 %v1094
    %1454 = vmatprep.subr.mxu0 0.0
    %1455 = vmatpush1.xpose.msra.mxu0 %v1097
    %1456 = vmatprep.subr.mxu0 0.0
    %1457 = vmatpush1.xpose.msra.mxu0 %v1100
    %1458 = vmatprep.subr.mxu0 0.0
    %1459 = vmatpush1.xpose.msra.mxu0 %v1103
    %1460 = vmatprep.subr.mxu0 0.0
    %1461 = vmatpush1.xpose.msra.mxu0 %v1106
    %1462 = vmatprep.subr.mxu0 0.0
    %1463 = vmatpush1.xpose.msra.mxu0 %v1109
    %1464 = vmatprep.subr.mxu0 0.0
    %1465 = vmatpush1.xpose.msra.mxu0 %v1112
    %1466 = vmatprep.subr.mxu0 0.0
    %1467 = vmatpush1.xpose.msra.mxu0 %v1115
    %1468 = vmatprep.subr.mxu0 0.0
    %1469 = vmatpush1.xpose.msra.mxu0 %v1118
    %1470 = vmatprep.subr.mxu0 0.0
    %1471 = vmatpush1.xpose.msra.mxu0 %v1121
    %1472 = vmatprep.subr.mxu0 0.0
    %1473 = vmatpush1.xpose.msra.mxu0 %v1124
    %1474 = vmatprep.subr.mxu0 0.0
    %1475 = vmatpush1.xpose.msra.mxu0 %v1127
    %1476 = vmatprep.subr.mxu0 0.0
    %1477 = vmatpush1.xpose.msra.mxu0 %v1130
    %1478 = vmatprep.subr.mxu0 0.0
    %1479 = vmatpush1.xpose.msra.mxu0 %v1133
    %1480 = vmatprep.subr.mxu0 0.0
    %1481 = vmatpush1.xpose.msra.mxu0 %v1136
    %1482 = vmatprep.subr.mxu0 0.0
    %1483 = vmatpush1.xpose.msra.mxu0 %v1139
    %1484 = vmatprep.subr.mxu0 0.0
    %1485 = vmatpush1.xpose.msra.mxu0 %v1142
    %1486 = vmatprep.subr.mxu0 0.0
    %1487 = vmatpush1.xpose.msra.mxu0 %v1145
    %1488 = vmatprep.subr.mxu0 0.0
    %1489 = vmatpush1.xpose.msra.mxu0 %v1148
    %1490 = vmatprep.subr.mxu0 0.0
    %1491 = vmatpush1.xpose.msra.mxu0 %v1151
    %1492 = vmatprep.subr.mxu0 0.0
    %1493 = vmatpush1.xpose.msra.mxu0 %v1154
    %1494 = vmatprep.subr.mxu0 0.0
    %1495 = vmatpush1.xpose.msra.mxu0 %v1157
    %1496 = vmatprep.subr.mxu0 0.0
    %1497 = vmatpush1.xpose.msra.mxu0 %v1160
    %1498 = vmatprep.subr.mxu0 0.0
    %1499 = vmatpush1.xpose.msra.mxu0 %v1163
    %1500 = vmatprep.subr.mxu0 0.0
    %1501 = vmatpush1.xpose.msra.mxu0 %v1166
    %1502 = vmatprep.subr.mxu0 0.0
    %1503 = vmatpush1.xpose.msra.mxu0 %v1169
    %1504 = vmatprep.subr.mxu0 0.0
    %1505 = vmatpush1.xpose.msra.mxu0 %v1172
    %1506 = vmatprep.subr.mxu0 0.0
    %1507 = vmatpush1.xpose.msra.mxu0 %v1175
    %1508 = vmatprep.subr.mxu0 0.0
    %1509 = vmatpush1.xpose.msra.mxu0 %v1178
    %1510 = vmatprep.subr.mxu0 0.0
    %1511 = vmatpush1.xpose.msra.mxu0 %v1181
    %1512 = vmatprep.subr.mxu0 0.0
    %1513 = vmatpush1.xpose.msra.mxu0 %v1184
    %1514 = vmatprep.subr.mxu0 0.0
    %1515 = vmatpush1.xpose.msra.mxu0 %v1187
    %1516 = vmatprep.mubr.f32.mxu0 0.0
    %1517 = vmatmul.mubr.f32.gmra.mrb[0].mxu0 %v303
    %v1518 = vpop.f32.mrb[0].mxu0
    %v1519 = vadd.f32 0.0, %v1518
    %v1520 = vpop.f32.mrb[0].mxu0
    %v1521 = vadd.f32 0.0, %v1520
    %1522 = vdwg.mxu0
    %1523 = vmatprep.subr.mxu0 0.0
    %1524 = vmatpush1.xpose.msra.mxu0 %v1190
    %1525 = vmatprep.subr.mxu0 0.0
    %1526 = vmatpush1.xpose.msra.mxu0 %v1193
    %1527 = vmatprep.subr.mxu0 0.0
    %1528 = vmatpush1.xpose.msra.mxu0 %v1196
    %1529 = vmatprep.subr.mxu0 0.0
    %1530 = vmatpush1.xpose.msra.mxu0 %v1199
    %1531 = vmatprep.subr.mxu0 0.0
    %1532 = vmatpush1.xpose.msra.mxu0 %v1202
    %1533 = vmatprep.subr.mxu0 0.0
    %1534 = vmatpush1.xpose.msra.mxu0 %v1205
    %1535 = vmatprep.subr.mxu0 0.0
    %1536 = vmatpush1.xpose.msra.mxu0 %v1208
    %1537 = vmatprep.subr.mxu0 0.0
    %1538 = vmatpush1.xpose.msra.mxu0 %v1211
    %1539 = vmatprep.subr.mxu0 0.0
    %1540 = vmatpush1.xpose.msra.mxu0 %v1214
    %1541 = vmatprep.subr.mxu0 0.0
    %1542 = vmatpush1.xpose.msra.mxu0 %v1217
    %1543 = vmatprep.subr.mxu0 0.0
    %1544 = vmatpush1.xpose.msra.mxu0 %v1220
    %1545 = vmatprep.subr.mxu0 0.0
    %1546 = vmatpush1.xpose.msra.mxu0 %v1223
    %1547 = vmatprep.subr.mxu0 0.0
    %1548 = vmatpush1.xpose.msra.mxu0 %v1226
    %1549 = vmatprep.subr.mxu0 0.0
    %1550 = vmatpush1.xpose.msra.mxu0 %v1229
    %1551 = vmatprep.subr.mxu0 0.0
    %1552 = vmatpush1.xpose.msra.mxu0 %v1232
    %1553 = vmatprep.subr.mxu0 0.0
    %1554 = vmatpush1.xpose.msra.mxu0 %v1235
    %1555 = vmatprep.subr.mxu0 0.0
    %1556 = vmatpush1.xpose.msra.mxu0 %v1238
    %1557 = vmatprep.subr.mxu0 0.0
    %1558 = vmatpush1.xpose.msra.mxu0 %v1241
    %1559 = vmatprep.subr.mxu0 0.0
    %1560 = vmatpush1.xpose.msra.mxu0 %v1244
    %1561 = vmatprep.subr.mxu0 0.0
    %1562 = vmatpush1.xpose.msra.mxu0 %v1247
    %1563 = vmatprep.subr.mxu0 0.0
    %1564 = vmatpush1.xpose.msra.mxu0 %v1250
    %1565 = vmatprep.subr.mxu0 0.0
    %1566 = vmatpush1.xpose.msra.mxu0 %v1253
    %1567 = vmatprep.subr.mxu0 0.0
    %1568 = vmatpush1.xpose.msra.mxu0 %v1256
    %1569 = vmatprep.subr.mxu0 0.0
    %1570 = vmatpush1.xpose.msra.mxu0 %v1259
    %1571 = vmatprep.subr.mxu0 0.0
    %1572 = vmatpush1.xpose.msra.mxu0 %v1262
    %1573 = vmatprep.subr.mxu0 0.0
    %1574 = vmatpush1.xpose.msra.mxu0 %v1265
    %1575 = vmatprep.subr.mxu0 0.0
    %1576 = vmatpush1.xpose.msra.mxu0 %v1268
    %1577 = vmatprep.subr.mxu0 0.0
    %1578 = vmatpush1.xpose.msra.mxu0 %v1271
    %1579 = vmatprep.subr.mxu0 0.0
    %1580 = vmatpush1.xpose.msra.mxu0 %v1274
    %1581 = vmatprep.subr.mxu0 0.0
    %1582 = vmatpush1.xpose.msra.mxu0 %v1277
    %1583 = vmatprep.subr.mxu0 0.0
    %1584 = vmatpush1.xpose.msra.mxu0 %v1280
    %1585 = vmatprep.subr.mxu0 0.0
    %1586 = vmatpush1.xpose.msra.mxu0 %v1283
    %1587 = vmatprep.mubr.f32.mxu0 0.0
    %1588 = vmatmul.mubr.f32.gmra.mrb[0].mxu0 %v303
    %v1589 = vpop.f32.mrb[0].mxu0
    %v1590 = vadd.f32 0.0, %v1589
    %v1591 = vpop.f32.mrb[0].mxu0
    %v1592 = vadd.f32 0.0, %v1591
    %1593 = vdwg.mxu0
    %1594 = vmatprep.subr.mxu0 0.0
    %1595 = vmatpush1.xpose.msra.mxu0 %v1286
    %1596 = vmatprep.subr.mxu0 0.0
    %1597 = vmatpush1.xpose.msra.mxu0 %v1289
    %1598 = vmatprep.subr.mxu0 0.0
    %1599 = vmatpush1.xpose.msra.mxu0 %v1292
    %1600 = vmatprep.subr.mxu0 0.0
    %1601 = vmatpush1.xpose.msra.mxu0 %v1295
    %1602 = vmatprep.subr.mxu0 0.0
    %1603 = vmatpush1.xpose.msra.mxu0 %v1298
    %1604 = vmatprep.subr.mxu0 0.0
    %1605 = vmatpush1.xpose.msra.mxu0 %v1301
    %1606 = vmatprep.subr.mxu0 0.0
    %1607 = vmatpush1.xpose.msra.mxu0 %v1304
    %1608 = vmatprep.subr.mxu0 0.0
    %1609 = vmatpush1.xpose.msra.mxu0 %v1307
    %1610 = vmatprep.subr.mxu0 0.0
    %1611 = vmatpush1.xpose.msra.mxu0 %v1310
    %1612 = vmatprep.subr.mxu0 0.0
    %1613 = vmatpush1.xpose.msra.mxu0 %v1313
    %1614 = vmatprep.subr.mxu0 0.0
    %1615 = vmatpush1.xpose.msra.mxu0 %v1316
    %1616 = vmatprep.subr.mxu0 0.0
    %1617 = vmatpush1.xpose.msra.mxu0 %v1319
    %1618 = vmatprep.subr.mxu0 0.0
    %1619 = vmatpush1.xpose.msra.mxu0 %v1322
    %1620 = vmatprep.subr.mxu0 0.0
    %1621 = vmatpush1.xpose.msra.mxu0 %v1325
    %1622 = vmatprep.subr.mxu0 0.0
    %1623 = vmatpush1.xpose.msra.mxu0 %v1328
    %1624 = vmatprep.subr.mxu0 0.0
    %1625 = vmatpush1.xpose.msra.mxu0 %v1331
    %1626 = vmatprep.subr.mxu0 0.0
    %1627 = vmatpush1.xpose.msra.mxu0 %v1334
    %1628 = vmatprep.subr.mxu0 0.0
    %1629 = vmatpush1.xpose.msra.mxu0 %v1337
    %1630 = vmatprep.subr.mxu0 0.0
    %1631 = vmatpush1.xpose.msra.mxu0 %v1340
    %1632 = vmatprep.subr.mxu0 0.0
    %1633 = vmatpush1.xpose.msra.mxu0 %v1343
    %1634 = vmatprep.subr.mxu0 0.0
    %1635 = vmatpush1.xpose.msra.mxu0 %v1346
    %1636 = vmatprep.subr.mxu0 0.0
    %1637 = vmatpush1.xpose.msra.mxu0 %v1349
    %1638 = vmatprep.subr.mxu0 0.0
    %1639 = vmatpush1.xpose.msra.mxu0 %v1352
    %1640 = vmatprep.subr.mxu0 0.0
    %1641 = vmatpush1.xpose.msra.mxu0 %v1355
    %1642 = vmatprep.subr.mxu0 0.0
    %1643 = vmatpush1.xpose.msra.mxu0 %v1358
    %1644 = vmatprep.subr.mxu0 0.0
    %1645 = vmatpush1.xpose.msra.mxu0 %v1361
    %1646 = vmatprep.subr.mxu0 0.0
    %1647 = vmatpush1.xpose.msra.mxu0 %v1364
    %1648 = vmatprep.subr.mxu0 0.0
    %1649 = vmatpush1.xpose.msra.mxu0 %v1367
    %1650 = vmatprep.subr.mxu0 0.0
    %1651 = vmatpush1.xpose.msra.mxu0 %v1370
    %1652 = vmatprep.subr.mxu0 0.0
    %1653 = vmatpush1.xpose.msra.mxu0 %v1373
    %1654 = vmatprep.subr.mxu0 0.0
    %1655 = vmatpush1.xpose.msra.mxu0 %v1376
    %1656 = vmatprep.subr.mxu0 0.0
    %1657 = vmatpush1.xpose.msra.mxu0 %v1379
    %1658 = vmatprep.mubr.f32.mxu0 0.0
    %1659 = vmatmul.mubr.f32.gmra.mrb[0].mxu0 %v303
    %v1660 = vpop.f32.mrb[0].mxu0
    %v1661 = vadd.f32 0.0, %v1660
    %v1662 = vpop.f32.mrb[0].mxu0
    %v1663 = vadd.f32 0.0, %v1662
    %1664 = vdwg.mxu0
    %v1665 = vmul.f32 %v762, %v762
    %v1666 = vmul.f32 %v764, %v764
    %v1667 = vmul.f32 %v839, %v839
    %v1668 = vmul.f32 %v841, %v841
    %v1669 = vmul.f32 %v916, %v916
    %v1670 = vmul.f32 %v918, %v918
    %v1671 = vmul.f32 %v993, %v993
    %v1672 = vmul.f32 %v995, %v995
    %v1673 = vsub.f32 %v1448, %v1665
    %v1674 = vsub.f32 %v1450, %v1666
    %v1675 = vsub.f32 %v1519, %v1667
    %v1676 = vsub.f32 %v1521, %v1668
    %v1677 = vsub.f32 %v1590, %v1669
    %v1678 = vsub.f32 %v1592, %v1670
    %v1679 = vsub.f32 %v1661, %v1671
    %v1680 = vsub.f32 %v1663, %v1672
    %v1681 = vadd.f32 %v1673, 1e-05
    %v1682 = vadd.f32 %v1674, 1e-05
    %v1683 = vadd.f32 %v1675, 1e-05
    %v1684 = vadd.f32 %v1676, 1e-05
    %v1685 = vadd.f32 %v1677, 1e-05
    %v1686 = vadd.f32 %v1678, 1e-05
    %v1687 = vadd.f32 %v1679, 1e-05
    %v1688 = vadd.f32 %v1680, 1e-05
    %v1689 = vrsqrt.pop %v1681
    %v1690 = vrsqrt.pop %v1682
    %v1691 = vrsqrt.pop %v1683
    %v1692 = vrsqrt.pop %v1684
    %v1693 = vrsqrt.pop %v1685
    %v1694 = vrsqrt.pop %v1686
    %v1695 = vrsqrt.pop %v1687
    %v1696 = vrsqrt.pop %v1688
    %1698 = vset.pattern.permute.xlu0 0
    %1699 = vperm.xlu0 %1698, %v37
    %v1700 = vpop.permute.xlu0 %1699
    %v1702 = vlaneseq
    %v1703 = vshrl.u32 %v1702, 7
    %v1704 = vsub.s32 0, %v1703
    %v1705 = vrot.slane %v762, %v1704
    %v1706 = vlaneseq
    %v1707 = vshrl.u32 %v1706, 7
    %v1708 = vsub.s32 0, %v1707
    %v1709 = vrot.slane %v764, %v1708
    %v1710 = vlaneseq
    %v1711 = vshrl.u32 %v1710, 7
    %v1712 = vsub.s32 0, %v1711
    %v1713 = vrot.slane %v839, %v1712
    %v1714 = vlaneseq
    %v1715 = vshrl.u32 %v1714, 7
    %v1716 = vsub.s32 0, %v1715
    %v1717 = vrot.slane %v841, %v1716
    %v1718 = vlaneseq
    %v1719 = vshrl.u32 %v1718, 7
    %v1720 = vsub.s32 0, %v1719
    %v1721 = vrot.slane %v916, %v1720
    %v1722 = vlaneseq
    %v1723 = vshrl.u32 %v1722, 7
    %v1724 = vsub.s32 0, %v1723
    %v1725 = vrot.slane %v918, %v1724
    %v1726 = vlaneseq
    %v1727 = vshrl.u32 %v1726, 7
    %v1728 = vsub.s32 0, %v1727
    %v1729 = vrot.slane %v993, %v1728
    %v1730 = vlaneseq
    %v1731 = vshrl.u32 %v1730, 7
    %v1732 = vsub.s32 0, %v1731
    %v1733 = vrot.slane %v995, %v1732
    %v1734 = vmul.f32 %v1700, %v1705
    %v1735 = vmul.f32 %v1700, %v1709
    %v1736 = vmul.f32 %v1700, %v1713
    %v1737 = vmul.f32 %v1700, %v1717
    %v1738 = vmul.f32 %v1700, %v1721
    %v1739 = vmul.f32 %v1700, %v1725
    %v1740 = vmul.f32 %v1700, %v1729
    %v1741 = vmul.f32 %v1700, %v1733
    %v1742 = vsub.f32 %v756, %v1734
    %v1743 = vsub.f32 %v758, %v1735
    %v1744 = vsub.f32 %v833, %v1736
    %v1745 = vsub.f32 %v835, %v1737
    %v1746 = vsub.f32 %v910, %v1738
    %v1747 = vsub.f32 %v912, %v1739
    %v1748 = vsub.f32 %v987, %v1740
    %v1749 = vsub.f32 %v989, %v1741
    %v1750 = vlaneseq
    %v1751 = vshrl.u32 %v1750, 7
    %v1752 = vsub.s32 0, %v1751
    %v1753 = vrot.slane %v1689, %v1752
    %v1754 = vlaneseq
    %v1755 = vshrl.u32 %v1754, 7
    %v1756 = vsub.s32 0, %v1755
    %v1757 = vrot.slane %v1690, %v1756
    %v1758 = vlaneseq
    %v1759 = vshrl.u32 %v1758, 7
    %v1760 = vsub.s32 0, %v1759
    %v1761 = vrot.slane %v1691, %v1760
    %v1762 = vlaneseq
    %v1763 = vshrl.u32 %v1762, 7
    %v1764 = vsub.s32 0, %v1763
    %v1765 = vrot.slane %v1692, %v1764
    %v1766 = vlaneseq
    %v1767 = vshrl.u32 %v1766, 7
    %v1768 = vsub.s32 0, %v1767
    %v1769 = vrot.slane %v1693, %v1768
    %v1770 = vlaneseq
    %v1771 = vshrl.u32 %v1770, 7
    %v1772 = vsub.s32 0, %v1771
    %v1773 = vrot.slane %v1694, %v1772
    %v1774 = vlaneseq
    %v1775 = vshrl.u32 %v1774, 7
    %v1776 = vsub.s32 0, %v1775
    %v1777 = vrot.slane %v1695, %v1776
    %v1778 = vlaneseq
    %v1779 = vshrl.u32 %v1778, 7
    %v1780 = vsub.s32 0, %v1779
    %v1781 = vrot.slane %v1696, %v1780
    %v1782 = vmul.f32 %v1742, %v1753
    %v1783 = vmul.f32 %v1743, %v1757
    %v1784 = vmul.f32 %v1744, %v1761
    %v1785 = vmul.f32 %v1745, %v1765
    %v1786 = vmul.f32 %v1746, %v1769
    %v1787 = vmul.f32 %v1747, %v1773
    %v1788 = vmul.f32 %v1748, %v1777
    %v1789 = vmul.f32 %v1749, %v1781
    %v1790 = vmax.f32 %v1782, %v1783
    %1791 = vmax.xlane.f32.xlu0 %v1790
    %v1792 = vpop.xlane.xlu0 %1791
    %v1793 = vsub.f32 %v1782, %v1792
    %v1794 = vsub.f32 %v1783, %v1792
    %v1795 = vmul.f32 %v1793, 1.442695
    %v1796 = vpow.pop %v1795
    %v1797 = vmul.f32 %v1794, 1.442695
    %v1798 = vpow.pop %v1797
    %v1799 = vadd.f32 %v1796, %v1798
    %1800 = vadd.xlane.f32.xlu0 %v1799
    %v1801 = vpop.xlane.xlu0 %1800
    %v1802 = vrcp.pop %v1801
    %v1803 = vmul.f32 %v1796, %v1802
    %v1804 = vmul.f32 %v1798, %v1802
    %v1805 = vld [vmem:[#allocation2] sm:$0xff]
    %v1806 = vld [vmem:[#allocation2 + $0x8] sm:$0xff]
    %v1807 = vld [vmem:[#allocation2 + $0x10] sm:$0xff]
    %v1808 = vld [vmem:[#allocation2 + $0x18] sm:$0xff]
    %v1809 = vld [vmem:[#allocation2 + $0x20] sm:$0xff]
    %v1810 = vld [vmem:[#allocation2 + $0x28] sm:$0xff]
    %v1811 = vld [vmem:[#allocation2 + $0x30] sm:$0xff]
    %v1812 = vld [vmem:[#allocation2 + $0x38] sm:$0xff]
    %v1813 = vld [vmem:[#allocation2 + $0x40] sm:$0xff]
    %v1814 = vld [vmem:[#allocation2 + $0x48] sm:$0xff]
    %v1815 = vld [vmem:[#allocation2 + $0x50] sm:$0xff]
    %v1816 = vld [vmem:[#allocation2 + $0x58] sm:$0xff]
    %v1817 = vld [vmem:[#allocation2 + $0x60] sm:$0xff]
    %v1818 = vld [vmem:[#allocation2 + $0x68] sm:$0xff]
    %v1819 = vld [vmem:[#allocation2 + $0x70] sm:$0xff]
    %v1820 = vld [vmem:[#allocation2 + $0x78] sm:$0xff]
    %v1821 = vld [vmem:[#allocation2 + $0x80] sm:$0xff]
    %v1822 = vld [vmem:[#allocation2 + $0x88] sm:$0xff]
    %v1823 = vld [vmem:[#allocation2 + $0x90] sm:$0xff]
    %v1824 = vld [vmem:[#allocation2 + $0x98] sm:$0xff]
    %v1825 = vld [vmem:[#allocation2 + $0xa0] sm:$0xff]
    %v1826 = vld [vmem:[#allocation2 + $0xa8] sm:$0xff]
    %v1827 = vld [vmem:[#allocation2 + $0xb0] sm:$0xff]
    %v1828 = vld [vmem:[#allocation2 + $0xb8] sm:$0xff]
    %v1829 = vld [vmem:[#allocation2 + $0xc0] sm:$0xff]
    %v1830 = vld [vmem:[#allocation2 + $0xc8] sm:$0xff]
    %v1831 = vld [vmem:[#allocation2 + $0xd0] sm:$0xff]
    %v1832 = vld [vmem:[#allocation2 + $0xd8] sm:$0xff]
    %v1833 = vld [vmem:[#allocation2 + $0xe0] sm:$0xff]
    %v1834 = vld [vmem:[#allocation2 + $0xe8] sm:$0xff]
    %v1835 = vld [vmem:[#allocation2 + $0xf0] sm:$0xff]
    %v1836 = vld [vmem:[#allocation2 + $0xf8] sm:$0xff]
    %1837 = vmatprep.subr.mxu0 0.0
    %1838 = vmatpush1.msra.mxu0 %v1805
    %1839 = vmatprep.subr.mxu0 0.0
    %1840 = vmatpush1.msra.mxu0 %v1806
    %1841 = vmatprep.subr.mxu0 0.0
    %1842 = vmatpush1.msra.mxu0 %v1807
    %1843 = vmatprep.subr.mxu0 0.0
    %1844 = vmatpush1.msra.mxu0 %v1808
    %1845 = vmatprep.subr.mxu0 0.0
    %1846 = vmatpush1.msra.mxu0 %v1809
    %1847 = vmatprep.subr.mxu0 0.0
    %1848 = vmatpush1.msra.mxu0 %v1810
    %1849 = vmatprep.subr.mxu0 0.0
    %1850 = vmatpush1.msra.mxu0 %v1811
    %1851 = vmatprep.subr.mxu0 0.0
    %1852 = vmatpush1.msra.mxu0 %v1812
    %1853 = vmatprep.subr.mxu0 0.0
    %1854 = vmatpush1.msra.mxu0 %v1813
    %1855 = vmatprep.subr.mxu0 0.0
    %1856 = vmatpush1.msra.mxu0 %v1814
    %1857 = vmatprep.subr.mxu0 0.0
    %1858 = vmatpush1.msra.mxu0 %v1815
    %1859 = vmatprep.subr.mxu0 0.0
    %1860 = vmatpush1.msra.mxu0 %v1816
    %1861 = vmatprep.subr.mxu0 0.0
    %1862 = vmatpush1.msra.mxu0 %v1817
    %1863 = vmatprep.subr.mxu0 0.0
    %1864 = vmatpush1.msra.mxu0 %v1818
    %1865 = vmatprep.subr.mxu0 0.0
    %1866 = vmatpush1.msra.mxu0 %v1819
    %1867 = vmatprep.subr.mxu0 0.0
    %1868 = vmatpush1.msra.mxu0 %v1820
    %1869 = vmatprep.subr.mxu0 0.0
    %1870 = vmatpush1.msra.mxu0 %v1821
    %1871 = vmatprep.subr.mxu0 0.0
    %1872 = vmatpush1.msra.mxu0 %v1822
    %1873 = vmatprep.subr.mxu0 0.0
    %1874 = vmatpush1.msra.mxu0 %v1823
    %1875 = vmatprep.subr.mxu0 0.0
    %1876 = vmatpush1.msra.mxu0 %v1824
    %1877 = vmatprep.subr.mxu0 0.0
    %1878 = vmatpush1.msra.mxu0 %v1825
    %1879 = vmatprep.subr.mxu0 0.0
    %1880 = vmatpush1.msra.mxu0 %v1826
    %1881 = vmatprep.subr.mxu0 0.0
    %1882 = vmatpush1.msra.mxu0 %v1827
    %1883 = vmatprep.subr.mxu0 0.0
    %1884 = vmatpush1.msra.mxu0 %v1828
    %1885 = vmatprep.subr.mxu0 0.0
    %1886 = vmatpush1.msra.mxu0 %v1829
    %1887 = vmatprep.subr.mxu0 0.0
    %1888 = vmatpush1.msra.mxu0 %v1830
    %1889 = vmatprep.subr.mxu0 0.0
    %1890 = vmatpush1.msra.mxu0 %v1831
    %1891 = vmatprep.subr.mxu0 0.0
    %1892 = vmatpush1.msra.mxu0 %v1832
    %1893 = vmatprep.subr.mxu0 0.0
    %1894 = vmatpush1.msra.mxu0 %v1833
    %1895 = vmatprep.subr.mxu0 0.0
    %1896 = vmatpush1.msra.mxu0 %v1834
    %1897 = vmatprep.subr.mxu0 0.0
    %1898 = vmatpush1.msra.mxu0 %v1835
    %1899 = vmatprep.subr.mxu0 0.0
    %1900 = vmatpush1.msra.mxu0 %v1836
    %1901 = vmatprep.mubr.f32.mxu0 %v1804
    %1902 = vmatmul.mubr.f32.gmra.mrb[0].mxu0 %v1803
    %v1903 = vpop.f32.mrb[0].mxu0
    %v1904 = vadd.f32 0.0, %v1903
    %v1905 = vpop.f32.mrb[0].mxu0
    %1906 = vdwg.mxu0
    %v1908 = vsel %vm298, %v1904, 0
    %1910 = vmatprep.subr.mxu0 0.0
    %1911 = vmatpush1.msra.mxu0 %v38
    %1912 = vmatprep.subr.mxu0 0.0
    %1913 = vmatpush1.msra.mxu0 %v39
    %1914 = vmatprep.subr.mxu0 0.0
    %1915 = vmatpush1.msra.mxu0 %v40
    %1916 = vmatprep.subr.mxu0 0.0
    %1917 = vmatpush1.msra.mxu0 %v41
    %1918 = vmatprep.subr.mxu0 0.0
    %1919 = vmatpush1.msra.mxu0 0.0
    %1920 = vmatprep.subr.mxu0 0.0
    %1921 = vmatpush1.msra.mxu0 0.0
    %1922 = vmatprep.subr.mxu0 0.0
    %1923 = vmatpush1.msra.mxu0 0.0
    %1924 = vmatprep.subr.mxu0 0.0
    %1925 = vmatpush1.msra.mxu0 0.0
    %1926 = vmatprep.subr.mxu0 0.0
    %1927 = vmatpush1.msra.mxu0 0.0
    %1928 = vmatprep.subr.mxu0 0.0
    %1929 = vmatpush1.msra.mxu0 0.0
    %1930 = vmatprep.subr.mxu0 0.0
    %1931 = vmatpush1.msra.mxu0 0.0
    %1932 = vmatprep.subr.mxu0 0.0
    %1933 = vmatpush1.msra.mxu0 0.0
    %1934 = vmatprep.subr.mxu0 0.0
    %1935 = vmatpush1.msra.mxu0 0.0
    %1936 = vmatprep.subr.mxu0 0.0
    %1937 = vmatpush1.msra.mxu0 0.0
    %1938 = vmatprep.subr.mxu0 0.0
    %1939 = vmatpush1.msra.mxu0 0.0
    %1940 = vmatprep.subr.mxu0 0.0
    %1941 = vmatpush1.msra.mxu0 0.0
    %1942 = vmatprep.subr.mxu0 0.0
    %1943 = vmatpush1.msra.mxu0 0.0
    %1944 = vmatprep.subr.mxu0 0.0
    %1945 = vmatpush1.msra.mxu0 0.0
    %1946 = vmatprep.subr.mxu0 0.0
    %1947 = vmatpush1.msra.mxu0 0.0
    %1948 = vmatprep.subr.mxu0 0.0
    %1949 = vmatpush1.msra.mxu0 0.0
    %1950 = vmatprep.subr.mxu0 0.0
    %1951 = vmatpush1.msra.mxu0 0.0
    %1952 = vmatprep.subr.mxu0 0.0
    %1953 = vmatpush1.msra.mxu0 0.0
    %1954 = vmatprep.subr.mxu0 0.0
    %1955 = vmatpush1.msra.mxu0 0.0
    %1956 = vmatprep.subr.mxu0 0.0
    %1957 = vmatpush1.msra.mxu0 0.0
    %1958 = vmatprep.subr.mxu0 0.0
    %1959 = vmatpush1.msra.mxu0 0.0
    %1960 = vmatprep.subr.mxu0 0.0
    %1961 = vmatpush1.msra.mxu0 0.0
    %1962 = vmatprep.subr.mxu0 0.0
    %1963 = vmatpush1.msra.mxu0 0.0
    %1964 = vmatprep.subr.mxu0 0.0
    %1965 = vmatpush1.msra.mxu0 0.0
    %1966 = vmatprep.subr.mxu0 0.0
    %1967 = vmatpush1.msra.mxu0 0.0
    %1968 = vmatprep.subr.mxu0 0.0
    %1969 = vmatpush1.msra.mxu0 0.0
    %1970 = vmatprep.subr.mxu0 0.0
    %1971 = vmatpush1.msra.mxu0 0.0
    %1972 = vmatprep.subr.mxu0 0.0
    %1973 = vmatpush1.msra.mxu0 0.0
    %1974 = vmatprep.mubr.f32.mxu0 0.0
    %1975 = vmatmul.mubr.f32.gmra.mrb[0].mxu0 %v1908
    %v1976 = vpop.f32.mrb[0].mxu0
    %v1977 = vadd.f32 0.0, %v1976
    %v1978 = vpop.f32.mrb[0].mxu0
    %1979 = vdwg.mxu0
    %1980 = vst.msk [vmem:[#allocation5] sm:$0xff] %vm298, %v1977
    %1981 = vst [vmem:[#allocation6] sm:$0xff] %v1803
    %1982 = vst [vmem:[#allocation6 + $0x8] sm:$0xff] %v1804
    %v1983 = vmax.f32 %v1784, %v1785
    %1984 = vmax.xlane.f32.xlu0 %v1983
    %v1985 = vpop.xlane.xlu0 %1984
    %v1986 = vsub.f32 %v1784, %v1985
    %v1987 = vsub.f32 %v1785, %v1985
    %v1988 = vmul.f32 %v1986, 1.442695
    %v1989 = vpow.pop %v1988
    %v1990 = vmul.f32 %v1987, 1.442695
    %v1991 = vpow.pop %v1990
    %v1992 = vadd.f32 %v1989, %v1991
    %1993 = vadd.xlane.f32.xlu0 %v1992
    %v1994 = vpop.xlane.xlu0 %1993
    %v1995 = vrcp.pop %v1994
    %v1996 = vmul.f32 %v1989, %v1995
    %v1997 = vmul.f32 %v1991, %v1995
    %v1998 = vld [vmem:[#allocation2 + $0x100] sm:$0xff]
    %v1999 = vld [vmem:[#allocation2 + $0x108] sm:$0xff]
    %v2000 = vld [vmem:[#allocation2 + $0x110] sm:$0xff]
    %v2001 = vld [vmem:[#allocation2 + $0x118] sm:$0xff]
    %v2002 = vld [vmem:[#allocation2 + $0x120] sm:$0xff]
    %v2003 = vld [vmem:[#allocation2 + $0x128] sm:$0xff]
    %v2004 = vld [vmem:[#allocation2 + $0x130] sm:$0xff]
    %v2005 = vld [vmem:[#allocation2 + $0x138] sm:$0xff]
    %v2006 = vld [vmem:[#allocation2 + $0x140] sm:$0xff]
    %v2007 = vld [vmem:[#allocation2 + $0x148] sm:$0xff]
    %v2008 = vld [vmem:[#allocation2 + $0x150] sm:$0xff]
    %v2009 = vld [vmem:[#allocation2 + $0x158] sm:$0xff]
    %v2010 = vld [vmem:[#allocation2 + $0x160] sm:$0xff]
    %v2011 = vld [vmem:[#allocation2 + $0x168] sm:$0xff]
    %v2012 = vld [vmem:[#allocation2 + $0x170] sm:$0xff]
    %v2013 = vld [vmem:[#allocation2 + $0x178] sm:$0xff]
    %v2014 = vld [vmem:[#allocation2 + $0x180] sm:$0xff]
    %v2015 = vld [vmem:[#allocation2 + $0x188] sm:$0xff]
    %v2016 = vld [vmem:[#allocation2 + $0x190] sm:$0xff]
    %v2017 = vld [vmem:[#allocation2 + $0x198] sm:$0xff]
    %v2018 = vld [vmem:[#allocation2 + $0x1a0] sm:$0xff]
    %v2019 = vld [vmem:[#allocation2 + $0x1a8] sm:$0xff]
    %v2020 = vld [vmem:[#allocation2 + $0x1b0] sm:$0xff]
    %v2021 = vld [vmem:[#allocation2 + $0x1b8] sm:$0xff]
    %v2022 = vld [vmem:[#allocation2 + $0x1c0] sm:$0xff]
    %v2023 = vld [vmem:[#allocation2 + $0x1c8] sm:$0xff]
    %v2024 = vld [vmem:[#allocation2 + $0x1d0] sm:$0xff]
    %v2025 = vld [vmem:[#allocation2 + $0x1d8] sm:$0xff]
    %v2026 = vld [vmem:[#allocation2 + $0x1e0] sm:$0xff]
    %v2027 = vld [vmem:[#allocation2 + $0x1e8] sm:$0xff]
    %v2028 = vld [vmem:[#allocation2 + $0x1f0] sm:$0xff]
    %v2029 = vld [vmem:[#allocation2 + $0x1f8] sm:$0xff]
    %2030 = vmatprep.subr.mxu0 0.0
    %2031 = vmatpush1.msra.mxu0 %v1998
    %2032 = vmatprep.subr.mxu0 0.0
    %2033 = vmatpush1.msra.mxu0 %v1999
    %2034 = vmatprep.subr.mxu0 0.0
    %2035 = vmatpush1.msra.mxu0 %v2000
    %2036 = vmatprep.subr.mxu0 0.0
    %2037 = vmatpush1.msra.mxu0 %v2001
    %2038 = vmatprep.subr.mxu0 0.0
    %2039 = vmatpush1.msra.mxu0 %v2002
    %2040 = vmatprep.subr.mxu0 0.0
    %2041 = vmatpush1.msra.mxu0 %v2003
    %2042 = vmatprep.subr.mxu0 0.0
    %2043 = vmatpush1.msra.mxu0 %v2004
    %2044 = vmatprep.subr.mxu0 0.0
    %2045 = vmatpush1.msra.mxu0 %v2005
    %2046 = vmatprep.subr.mxu0 0.0
    %2047 = vmatpush1.msra.mxu0 %v2006
    %2048 = vmatprep.subr.mxu0 0.0
    %2049 = vmatpush1.msra.mxu0 %v2007
    %2050 = vmatprep.subr.mxu0 0.0
    %2051 = vmatpush1.msra.mxu0 %v2008
    %2052 = vmatprep.subr.mxu0 0.0
    %2053 = vmatpush1.msra.mxu0 %v2009
    %2054 = vmatprep.subr.mxu0 0.0
    %2055 = vmatpush1.msra.mxu0 %v2010
    %2056 = vmatprep.subr.mxu0 0.0
    %2057 = vmatpush1.msra.mxu0 %v2011
    %2058 = vmatprep.subr.mxu0 0.0
    %2059 = vmatpush1.msra.mxu0 %v2012
    %2060 = vmatprep.subr.mxu0 0.0
    %2061 = vmatpush1.msra.mxu0 %v2013
    %2062 = vmatprep.subr.mxu0 0.0
    %2063 = vmatpush1.msra.mxu0 %v2014
    %2064 = vmatprep.subr.mxu0 0.0
    %2065 = vmatpush1.msra.mxu0 %v2015
    %2066 = vmatprep.subr.mxu0 0.0
    %2067 = vmatpush1.msra.mxu0 %v2016
    %2068 = vmatprep.subr.mxu0 0.0
    %2069 = vmatpush1.msra.mxu0 %v2017
    %2070 = vmatprep.subr.mxu0 0.0
    %2071 = vmatpush1.msra.mxu0 %v2018
    %2072 = vmatprep.subr.mxu0 0.0
    %2073 = vmatpush1.msra.mxu0 %v2019
    %2074 = vmatprep.subr.mxu0 0.0
    %2075 = vmatpush1.msra.mxu0 %v2020
    %2076 = vmatprep.subr.mxu0 0.0
    %2077 = vmatpush1.msra.mxu0 %v2021
    %2078 = vmatprep.subr.mxu0 0.0
    %2079 = vmatpush1.msra.mxu0 %v2022
    %2080 = vmatprep.subr.mxu0 0.0
    %2081 = vmatpush1.msra.mxu0 %v2023
    %2082 = vmatprep.subr.mxu0 0.0
    %2083 = vmatpush1.msra.mxu0 %v2024
    %2084 = vmatprep.subr.mxu0 0.0
    %2085 = vmatpush1.msra.mxu0 %v2025
    %2086 = vmatprep.subr.mxu0 0.0
    %2087 = vmatpush1.msra.mxu0 %v2026
    %2088 = vmatprep.subr.mxu0 0.0
    %2089 = vmatpush1.msra.mxu0 %v2027
    %2090 = vmatprep.subr.mxu0 0.0
    %2091 = vmatpush1.msra.mxu0 %v2028
    %2092 = vmatprep.subr.mxu0 0.0
    %2093 = vmatpush1.msra.mxu0 %v2029
    %2094 = vmatprep.mubr.f32.mxu0 %v1997
    %2095 = vmatmul.mubr.f32.gmra.mrb[0].mxu0 %v1996
    %v2096 = vpop.f32.mrb[0].mxu0
    %v2097 = vadd.f32 0.0, %v2096
    %v2098 = vpop.f32.mrb[0].mxu0
    %2099 = vdwg.mxu0
    %v2101 = vsel %vm298, %v2097, 0
    %2103 = vmatprep.subr.mxu0 0.0
    %2104 = vmatpush1.msra.mxu0 %v38
    %2105 = vmatprep.subr.mxu0 0.0
    %2106 = vmatpush1.msra.mxu0 %v39
    %2107 = vmatprep.subr.mxu0 0.0
    %2108 = vmatpush1.msra.mxu0 %v40
    %2109 = vmatprep.subr.mxu0 0.0
    %2110 = vmatpush1.msra.mxu0 %v41
    %2111 = vmatprep.subr.mxu0 0.0
    %2112 = vmatpush1.msra.mxu0 0.0
    %2113 = vmatprep.subr.mxu0 0.0
    %2114 = vmatpush1.msra.mxu0 0.0
    %2115 = vmatprep.subr.mxu0 0.0
    %2116 = vmatpush1.msra.mxu0 0.0
    %2117 = vmatprep.subr.mxu0 0.0
    %2118 = vmatpush1.msra.mxu0 0.0
    %2119 = vmatprep.subr.mxu0 0.0
    %2120 = vmatpush1.msra.mxu0 0.0
    %2121 = vmatprep.subr.mxu0 0.0
    %2122 = vmatpush1.msra.mxu0 0.0
    %2123 = vmatprep.subr.mxu0 0.0
    %2124 = vmatpush1.msra.mxu0 0.0
    %2125 = vmatprep.subr.mxu0 0.0
    %2126 = vmatpush1.msra.mxu0 0.0
    %2127 = vmatprep.subr.mxu0 0.0
    %2128 = vmatpush1.msra.mxu0 0.0
    %2129 = vmatprep.subr.mxu0 0.0
    %2130 = vmatpush1.msra.mxu0 0.0
    %2131 = vmatprep.subr.mxu0 0.0
    %2132 = vmatpush1.msra.mxu0 0.0
    %2133 = vmatprep.subr.mxu0 0.0
    %2134 = vmatpush1.msra.mxu0 0.0
    %2135 = vmatprep.subr.mxu0 0.0
    %2136 = vmatpush1.msra.mxu0 0.0
    %2137 = vmatprep.subr.mxu0 0.0
    %2138 = vmatpush1.msra.mxu0 0.0
    %2139 = vmatprep.subr.mxu0 0.0
    %2140 = vmatpush1.msra.mxu0 0.0
    %2141 = vmatprep.subr.mxu0 0.0
    %2142 = vmatpush1.msra.mxu0 0.0
    %2143 = vmatprep.subr.mxu0 0.0
    %2144 = vmatpush1.msra.mxu0 0.0
    %2145 = vmatprep.subr.mxu0 0.0
    %2146 = vmatpush1.msra.mxu0 0.0
    %2147 = vmatprep.subr.mxu0 0.0
    %2148 = vmatpush1.msra.mxu0 0.0
    %2149 = vmatprep.subr.mxu0 0.0
    %2150 = vmatpush1.msra.mxu0 0.0
    %2151 = vmatprep.subr.mxu0 0.0
    %2152 = vmatpush1.msra.mxu0 0.0
    %2153 = vmatprep.subr.mxu0 0.0
    %2154 = vmatpush1.msra.mxu0 0.0
    %2155 = vmatprep.subr.mxu0 0.0
    %2156 = vmatpush1.msra.mxu0 0.0
    %2157 = vmatprep.subr.mxu0 0.0
    %2158 = vmatpush1.msra.mxu0 0.0
    %2159 = vmatprep.subr.mxu0 0.0
    %2160 = vmatpush1.msra.mxu0 0.0
    %2161 = vmatprep.subr.mxu0 0.0
    %2162 = vmatpush1.msra.mxu0 0.0
    %2163 = vmatprep.subr.mxu0 0.0
    %2164 = vmatpush1.msra.mxu0 0.0
    %2165 = vmatprep.subr.mxu0 0.0
    %2166 = vmatpush1.msra.mxu0 0.0
    %2167 = vmatprep.mubr.f32.mxu0 0.0
    %2168 = vmatmul.mubr.f32.gmra.mrb[0].mxu0 %v2101
    %v2169 = vpop.f32.mrb[0].mxu0
    %v2170 = vadd.f32 0.0, %v2169
    %v2171 = vpop.f32.mrb[0].mxu0
    %2172 = vdwg.mxu0
    %s2173 = scalar_lea.vmem [#allocation5], 8
    %2174 = vst.msk [vmem:[%s2173] sm:$0xff] %vm298, %v2170
    %s2175 = scalar_lea.vmem [#allocation6], 16
    %2176 = vst [vmem:[%s2175] sm:$0xff] %v1996
    %2177 = vst [vmem:[%s2175 + $0x8] sm:$0xff] %v1997
    %v2178 = vmax.f32 %v1786, %v1787
    %2179 = vmax.xlane.f32.xlu0 %v2178
    %v2180 = vpop.xlane.xlu0 %2179
    %v2181 = vsub.f32 %v1786, %v2180
    %v2182 = vsub.f32 %v1787, %v2180
    %v2183 = vmul.f32 %v2181, 1.442695
    %v2184 = vpow.pop %v2183
    %v2185 = vmul.f32 %v2182, 1.442695
    %v2186 = vpow.pop %v2185
    %v2187 = vadd.f32 %v2184, %v2186
    %2188 = vadd.xlane.f32.xlu0 %v2187
    %v2189 = vpop.xlane.xlu0 %2188
    %v2190 = vrcp.pop %v2189
    %v2191 = vmul.f32 %v2184, %v2190
    %v2192 = vmul.f32 %v2186, %v2190
    %v2193 = vld [vmem:[#allocation2 + $0x200] sm:$0xff]
    %v2194 = vld [vmem:[#allocation2 + $0x208] sm:$0xff]
    %v2195 = vld [vmem:[#allocation2 + $0x210] sm:$0xff]
    %v2196 = vld [vmem:[#allocation2 + $0x218] sm:$0xff]
    %v2197 = vld [vmem:[#allocation2 + $0x220] sm:$0xff]
    %v2198 = vld [vmem:[#allocation2 + $0x228] sm:$0xff]
    %v2199 = vld [vmem:[#allocation2 + $0x230] sm:$0xff]
    %v2200 = vld [vmem:[#allocation2 + $0x238] sm:$0xff]
    %v2201 = vld [vmem:[#allocation2 + $0x240] sm:$0xff]
    %v2202 = vld [vmem:[#allocation2 + $0x248] sm:$0xff]
    %v2203 = vld [vmem:[#allocation2 + $0x250] sm:$0xff]
    %v2204 = vld [vmem:[#allocation2 + $0x258] sm:$0xff]
    %v2205 = vld [vmem:[#allocation2 + $0x260] sm:$0xff]
    %v2206 = vld [vmem:[#allocation2 + $0x268] sm:$0xff]
    %v2207 = vld [vmem:[#allocation2 + $0x270] sm:$0xff]
    %v2208 = vld [vmem:[#allocation2 + $0x278] sm:$0xff]
    %v2209 = vld [vmem:[#allocation2 + $0x280] sm:$0xff]
    %v2210 = vld [vmem:[#allocation2 + $0x288] sm:$0xff]
    %v2211 = vld [vmem:[#allocation2 + $0x290] sm:$0xff]
    %v2212 = vld [vmem:[#allocation2 + $0x298] sm:$0xff]
    %v2213 = vld [vmem:[#allocation2 + $0x2a0] sm:$0xff]
    %v2214 = vld [vmem:[#allocation2 + $0x2a8] sm:$0xff]
    %v2215 = vld [vmem:[#allocation2 + $0x2b0] sm:$0xff]
    %v2216 = vld [vmem:[#allocation2 + $0x2b8] sm:$0xff]
    %v2217 = vld [vmem:[#allocation2 + $0x2c0] sm:$0xff]
    %v2218 = vld [vmem:[#allocation2 + $0x2c8] sm:$0xff]
    %v2219 = vld [vmem:[#allocation2 + $0x2d0] sm:$0xff]
    %v2220 = vld [vmem:[#allocation2 + $0x2d8] sm:$0xff]
    %v2221 = vld [vmem:[#allocation2 + $0x2e0] sm:$0xff]
    %v2222 = vld [vmem:[#allocation2 + $0x2e8] sm:$0xff]
    %v2223 = vld [vmem:[#allocation2 + $0x2f0] sm:$0xff]
    %v2224 = vld [vmem:[#allocation2 + $0x2f8] sm:$0xff]
    %2225 = vmatprep.subr.mxu0 0.0
    %2226 = vmatpush1.msra.mxu0 %v2193
    %2227 = vmatprep.subr.mxu0 0.0
    %2228 = vmatpush1.msra.mxu0 %v2194
    %2229 = vmatprep.subr.mxu0 0.0
    %2230 = vmatpush1.msra.mxu0 %v2195
    %2231 = vmatprep.subr.mxu0 0.0
    %2232 = vmatpush1.msra.mxu0 %v2196
    %2233 = vmatprep.subr.mxu0 0.0
    %2234 = vmatpush1.msra.mxu0 %v2197
    %2235 = vmatprep.subr.mxu0 0.0
    %2236 = vmatpush1.msra.mxu0 %v2198
    %2237 = vmatprep.subr.mxu0 0.0
    %2238 = vmatpush1.msra.mxu0 %v2199
    %2239 = vmatprep.subr.mxu0 0.0
    %2240 = vmatpush1.msra.mxu0 %v2200
    %2241 = vmatprep.subr.mxu0 0.0
    %2242 = vmatpush1.msra.mxu0 %v2201
    %2243 = vmatprep.subr.mxu0 0.0
    %2244 = vmatpush1.msra.mxu0 %v2202
    %2245 = vmatprep.subr.mxu0 0.0
    %2246 = vmatpush1.msra.mxu0 %v2203
    %2247 = vmatprep.subr.mxu0 0.0
    %2248 = vmatpush1.msra.mxu0 %v2204
    %2249 = vmatprep.subr.mxu0 0.0
    %2250 = vmatpush1.msra.mxu0 %v2205
    %2251 = vmatprep.subr.mxu0 0.0
    %2252 = vmatpush1.msra.mxu0 %v2206
    %2253 = vmatprep.subr.mxu0 0.0
    %2254 = vmatpush1.msra.mxu0 %v2207
    %2255 = vmatprep.subr.mxu0 0.0
    %2256 = vmatpush1.msra.mxu0 %v2208
    %2257 = vmatprep.subr.mxu0 0.0
    %2258 = vmatpush1.msra.mxu0 %v2209
    %2259 = vmatprep.subr.mxu0 0.0
    %2260 = vmatpush1.msra.mxu0 %v2210
    %2261 = vmatprep.subr.mxu0 0.0
    %2262 = vmatpush1.msra.mxu0 %v2211
    %2263 = vmatprep.subr.mxu0 0.0
    %2264 = vmatpush1.msra.mxu0 %v2212
    %2265 = vmatprep.subr.mxu0 0.0
    %2266 = vmatpush1.msra.mxu0 %v2213
    %2267 = vmatprep.subr.mxu0 0.0
    %2268 = vmatpush1.msra.mxu0 %v2214
    %2269 = vmatprep.subr.mxu0 0.0
    %2270 = vmatpush1.msra.mxu0 %v2215
    %2271 = vmatprep.subr.mxu0 0.0
    %2272 = vmatpush1.msra.mxu0 %v2216
    %2273 = vmatprep.subr.mxu0 0.0
    %2274 = vmatpush1.msra.mxu0 %v2217
    %2275 = vmatprep.subr.mxu0 0.0
    %2276 = vmatpush1.msra.mxu0 %v2218
    %2277 = vmatprep.subr.mxu0 0.0
    %2278 = vmatpush1.msra.mxu0 %v2219
    %2279 = vmatprep.subr.mxu0 0.0
    %2280 = vmatpush1.msra.mxu0 %v2220
    %2281 = vmatprep.subr.mxu0 0.0
    %2282 = vmatpush1.msra.mxu0 %v2221
    %2283 = vmatprep.subr.mxu0 0.0
    %2284 = vmatpush1.msra.mxu0 %v2222
    %2285 = vmatprep.subr.mxu0 0.0
    %2286 = vmatpush1.msra.mxu0 %v2223
    %2287 = vmatprep.subr.mxu0 0.0
    %2288 = vmatpush1.msra.mxu0 %v2224
    %2289 = vmatprep.mubr.f32.mxu0 %v2192
    %2290 = vmatmul.mubr.f32.gmra.mrb[0].mxu0 %v2191
    %v2291 = vpop.f32.mrb[0].mxu0
    %v2292 = vadd.f32 0.0, %v2291
    %v2293 = vpop.f32.mrb[0].mxu0
    %2294 = vdwg.mxu0
    %v2296 = vsel %vm298, %v2292, 0
    %2298 = vmatprep.subr.mxu0 0.0
    %2299 = vmatpush1.msra.mxu0 %v38
    %2300 = vmatprep.subr.mxu0 0.0
    %2301 = vmatpush1.msra.mxu0 %v39
    %2302 = vmatprep.subr.mxu0 0.0
    %2303 = vmatpush1.msra.mxu0 %v40
    %2304 = vmatprep.subr.mxu0 0.0
    %2305 = vmatpush1.msra.mxu0 %v41
    %2306 = vmatprep.subr.mxu0 0.0
    %2307 = vmatpush1.msra.mxu0 0.0
    %2308 = vmatprep.subr.mxu0 0.0
    %2309 = vmatpush1.msra.mxu0 0.0
    %2310 = vmatprep.subr.mxu0 0.0
    %2311 = vmatpush1.msra.mxu0 0.0
    %2312 = vmatprep.subr.mxu0 0.0
    %2313 = vmatpush1.msra.mxu0 0.0
    %2314 = vmatprep.subr.mxu0 0.0
    %2315 = vmatpush1.msra.mxu0 0.0
    %2316 = vmatprep.subr.mxu0 0.0
    %2317 = vmatpush1.msra.mxu0 0.0
    %2318 = vmatprep.subr.mxu0 0.0
    %2319 = vmatpush1.msra.mxu0 0.0
    %2320 = vmatprep.subr.mxu0 0.0
    %2321 = vmatpush1.msra.mxu0 0.0
    %2322 = vmatprep.subr.mxu0 0.0
    %2323 = vmatpush1.msra.mxu0 0.0
    %2324 = vmatprep.subr.mxu0 0.0
    %2325 = vmatpush1.msra.mxu0 0.0
    %2326 = vmatprep.subr.mxu0 0.0
    %2327 = vmatpush1.msra.mxu0 0.0
    %2328 = vmatprep.subr.mxu0 0.0
    %2329 = vmatpush1.msra.mxu0 0.0
    %2330 = vmatprep.subr.mxu0 0.0
    %2331 = vmatpush1.msra.mxu0 0.0
    %2332 = vmatprep.subr.mxu0 0.0
    %2333 = vmatpush1.msra.mxu0 0.0
    %2334 = vmatprep.subr.mxu0 0.0
    %2335 = vmatpush1.msra.mxu0 0.0
    %2336 = vmatprep.subr.mxu0 0.0
    %2337 = vmatpush1.msra.mxu0 0.0
    %2338 = vmatprep.subr.mxu0 0.0
    %2339 = vmatpush1.msra.mxu0 0.0
    %2340 = vmatprep.subr.mxu0 0.0
    %2341 = vmatpush1.msra.mxu0 0.0
    %2342 = vmatprep.subr.mxu0 0.0
    %2343 = vmatpush1.msra.mxu0 0.0
    %2344 = vmatprep.subr.mxu0 0.0
    %2345 = vmatpush1.msra.mxu0 0.0
    %2346 = vmatprep.subr.mxu0 0.0
    %2347 = vmatpush1.msra.mxu0 0.0
    %2348 = vmatprep.subr.mxu0 0.0
    %2349 = vmatpush1.msra.mxu0 0.0
    %2350 = vmatprep.subr.mxu0 0.0
    %2351 = vmatpush1.msra.mxu0 0.0
    %2352 = vmatprep.subr.mxu0 0.0
    %2353 = vmatpush1.msra.mxu0 0.0
    %2354 = vmatprep.subr.mxu0 0.0
    %2355 = vmatpush1.msra.mxu0 0.0
    %2356 = vmatprep.subr.mxu0 0.0
    %2357 = vmatpush1.msra.mxu0 0.0
    %2358 = vmatprep.subr.mxu0 0.0
    %2359 = vmatpush1.msra.mxu0 0.0
    %2360 = vmatprep.subr.mxu0 0.0
    %2361 = vmatpush1.msra.mxu0 0.0
    %2362 = vmatprep.mubr.f32.mxu0 0.0
    %2363 = vmatmul.mubr.f32.gmra.mrb[0].mxu0 %v2296
    %v2364 = vpop.f32.mrb[0].mxu0
    %v2365 = vadd.f32 0.0, %v2364
    %v2366 = vpop.f32.mrb[0].mxu0
    %2367 = vdwg.mxu0
    %s2368 = scalar_lea.vmem [#allocation5], 16
    %2369 = vst.msk [vmem:[%s2368] sm:$0xff] %vm298, %v2365
    %s2370 = scalar_lea.vmem [#allocation6], 32
    %2371 = vst [vmem:[%s2370] sm:$0xff] %v2191
    %2372 = vst [vmem:[%s2370 + $0x8] sm:$0xff] %v2192
    %v2373 = vmax.f32 %v1788, %v1789
    %2374 = vmax.xlane.f32.xlu0 %v2373
    %v2375 = vpop.xlane.xlu0 %2374
    %v2376 = vsub.f32 %v1788, %v2375
    %v2377 = vsub.f32 %v1789, %v2375
    %v2378 = vmul.f32 %v2376, 1.442695
    %v2379 = vpow.pop %v2378
    %v2380 = vmul.f32 %v2377, 1.442695
    %v2381 = vpow.pop %v2380
    %v2382 = vadd.f32 %v2379, %v2381
    %2383 = vadd.xlane.f32.xlu0 %v2382
    %v2384 = vpop.xlane.xlu0 %2383
    %v2385 = vrcp.pop %v2384
    %v2386 = vmul.f32 %v2379, %v2385
    %v2387 = vmul.f32 %v2381, %v2385
    %v2388 = vld [vmem:[#allocation2 + $0x300] sm:$0xff]
    %v2389 = vld [vmem:[#allocation2 + $0x308] sm:$0xff]
    %v2390 = vld [vmem:[#allocation2 + $0x310] sm:$0xff]
    %v2391 = vld [vmem:[#allocation2 + $0x318] sm:$0xff]
    %v2392 = vld [vmem:[#allocation2 + $0x320] sm:$0xff]
    %v2393 = vld [vmem:[#allocation2 + $0x328] sm:$0xff]
    %v2394 = vld [vmem:[#allocation2 + $0x330] sm:$0xff]
    %v2395 = vld [vmem:[#allocation2 + $0x338] sm:$0xff]
    %v2396 = vld [vmem:[#allocation2 + $0x340] sm:$0xff]
    %v2397 = vld [vmem:[#allocation2 + $0x348] sm:$0xff]
    %v2398 = vld [vmem:[#allocation2 + $0x350] sm:$0xff]
    %v2399 = vld [vmem:[#allocation2 + $0x358] sm:$0xff]
    %v2400 = vld [vmem:[#allocation2 + $0x360] sm:$0xff]
    %v2401 = vld [vmem:[#allocation2 + $0x368] sm:$0xff]
    %v2402 = vld [vmem:[#allocation2 + $0x370] sm:$0xff]
    %v2403 = vld [vmem:[#allocation2 + $0x378] sm:$0xff]
    %v2404 = vld [vmem:[#allocation2 + $0x380] sm:$0xff]
    %v2405 = vld [vmem:[#allocation2 + $0x388] sm:$0xff]
    %v2406 = vld [vmem:[#allocation2 + $0x390] sm:$0xff]
    %v2407 = vld [vmem:[#allocation2 + $0x398] sm:$0xff]
    %v2408 = vld [vmem:[#allocation2 + $0x3a0] sm:$0xff]
    %v2409 = vld [vmem:[#allocation2 + $0x3a8] sm:$0xff]
    %v2410 = vld [vmem:[#allocation2 + $0x3b0] sm:$0xff]
    %v2411 = vld [vmem:[#allocation2 + $0x3b8] sm:$0xff]
    %v2412 = vld [vmem:[#allocation2 + $0x3c0] sm:$0xff]
    %v2413 = vld [vmem:[#allocation2 + $0x3c8] sm:$0xff]
    %v2414 = vld [vmem:[#allocation2 + $0x3d0] sm:$0xff]
    %v2415 = vld [vmem:[#allocation2 + $0x3d8] sm:$0xff]
    %v2416 = vld [vmem:[#allocation2 + $0x3e0] sm:$0xff]
    %v2417 = vld [vmem:[#allocation2 + $0x3e8] sm:$0xff]
    %v2418 = vld [vmem:[#allocation2 + $0x3f0] sm:$0xff]
    %v2419 = vld [vmem:[#allocation2 + $0x3f8] sm:$0xff]
    %2420 = vmatprep.subr.mxu0 0.0
    %2421 = vmatpush1.msra.mxu0 %v2388
    %2422 = vmatprep.subr.mxu0 0.0
    %2423 = vmatpush1.msra.mxu0 %v2389
    %2424 = vmatprep.subr.mxu0 0.0
    %2425 = vmatpush1.msra.mxu0 %v2390
    %2426 = vmatprep.subr.mxu0 0.0
    %2427 = vmatpush1.msra.mxu0 %v2391
    %2428 = vmatprep.subr.mxu0 0.0
    %2429 = vmatpush1.msra.mxu0 %v2392
    %2430 = vmatprep.subr.mxu0 0.0
    %2431 = vmatpush1.msra.mxu0 %v2393
    %2432 = vmatprep.subr.mxu0 0.0
    %2433 = vmatpush1.msra.mxu0 %v2394
    %2434 = vmatprep.subr.mxu0 0.0
    %2435 = vmatpush1.msra.mxu0 %v2395
    %2436 = vmatprep.subr.mxu0 0.0
    %2437 = vmatpush1.msra.mxu0 %v2396
    %2438 = vmatprep.subr.mxu0 0.0
    %2439 = vmatpush1.msra.mxu0 %v2397
    %2440 = vmatprep.subr.mxu0 0.0
    %2441 = vmatpush1.msra.mxu0 %v2398
    %2442 = vmatprep.subr.mxu0 0.0
    %2443 = vmatpush1.msra.mxu0 %v2399
    %2444 = vmatprep.subr.mxu0 0.0
    %2445 = vmatpush1.msra.mxu0 %v2400
    %2446 = vmatprep.subr.mxu0 0.0
    %2447 = vmatpush1.msra.mxu0 %v2401
    %2448 = vmatprep.subr.mxu0 0.0
    %2449 = vmatpush1.msra.mxu0 %v2402
    %2450 = vmatprep.subr.mxu0 0.0
    %2451 = vmatpush1.msra.mxu0 %v2403
    %2452 = vmatprep.subr.mxu0 0.0
    %2453 = vmatpush1.msra.mxu0 %v2404
    %2454 = vmatprep.subr.mxu0 0.0
    %2455 = vmatpush1.msra.mxu0 %v2405
    %2456 = vmatprep.subr.mxu0 0.0
    %2457 = vmatpush1.msra.mxu0 %v2406
    %2458 = vmatprep.subr.mxu0 0.0
    %2459 = vmatpush1.msra.mxu0 %v2407
    %2460 = vmatprep.subr.mxu0 0.0
    %2461 = vmatpush1.msra.mxu0 %v2408
    %2462 = vmatprep.subr.mxu0 0.0
    %2463 = vmatpush1.msra.mxu0 %v2409
    %2464 = vmatprep.subr.mxu0 0.0
    %2465 = vmatpush1.msra.mxu0 %v2410
    %2466 = vmatprep.subr.mxu0 0.0
    %2467 = vmatpush1.msra.mxu0 %v2411
    %2468 = vmatprep.subr.mxu0 0.0
    %2469 = vmatpush1.msra.mxu0 %v2412
    %2470 = vmatprep.subr.mxu0 0.0
    %2471 = vmatpush1.msra.mxu0 %v2413
    %2472 = vmatprep.subr.mxu0 0.0
    %2473 = vmatpush1.msra.mxu0 %v2414
    %2474 = vmatprep.subr.mxu0 0.0
    %2475 = vmatpush1.msra.mxu0 %v2415
    %2476 = vmatprep.subr.mxu0 0.0
    %2477 = vmatpush1.msra.mxu0 %v2416
    %2478 = vmatprep.subr.mxu0 0.0
    %2479 = vmatpush1.msra.mxu0 %v2417
    %2480 = vmatprep.subr.mxu0 0.0
    %2481 = vmatpush1.msra.mxu0 %v2418
    %2482 = vmatprep.subr.mxu0 0.0
    %2483 = vmatpush1.msra.mxu0 %v2419
    %2484 = vmatprep.mubr.f32.mxu0 %v2387
    %2485 = vmatmul.mubr.f32.gmra.mrb[0].mxu0 %v2386
    %v2486 = vpop.f32.mrb[0].mxu0
    %v2487 = vadd.f32 0.0, %v2486
    %v2488 = vpop.f32.mrb[0].mxu0
    %2489 = vdwg.mxu0
    %v2491 = vsel %vm298, %v2487, 0
    %2493 = vmatprep.subr.mxu0 0.0
    %2494 = vmatpush1.msra.mxu0 %v38
    %2495 = vmatprep.subr.mxu0 0.0
    %2496 = vmatpush1.msra.mxu0 %v39
    %2497 = vmatprep.subr.mxu0 0.0
    %2498 = vmatpush1.msra.mxu0 %v40
    %2499 = vmatprep.subr.mxu0 0.0
    %2500 = vmatpush1.msra.mxu0 %v41
    %2501 = vmatprep.subr.mxu0 0.0
    %2502 = vmatpush1.msra.mxu0 0.0
    %2503 = vmatprep.subr.mxu0 0.0
    %2504 = vmatpush1.msra.mxu0 0.0
    %2505 = vmatprep.subr.mxu0 0.0
    %2506 = vmatpush1.msra.mxu0 0.0
    %2507 = vmatprep.subr.mxu0 0.0
    %2508 = vmatpush1.msra.mxu0 0.0
    %2509 = vmatprep.subr.mxu0 0.0
    %2510 = vmatpush1.msra.mxu0 0.0
    %2511 = vmatprep.subr.mxu0 0.0
    %2512 = vmatpush1.msra.mxu0 0.0
    %2513 = vmatprep.subr.mxu0 0.0
    %2514 = vmatpush1.msra.mxu0 0.0
    %2515 = vmatprep.subr.mxu0 0.0
    %2516 = vmatpush1.msra.mxu0 0.0
    %2517 = vmatprep.subr.mxu0 0.0
    %2518 = vmatpush1.msra.mxu0 0.0
    %2519 = vmatprep.subr.mxu0 0.0
    %2520 = vmatpush1.msra.mxu0 0.0
    %2521 = vmatprep.subr.mxu0 0.0
    %2522 = vmatpush1.msra.mxu0 0.0
    %2523 = vmatprep.subr.mxu0 0.0
    %2524 = vmatpush1.msra.mxu0 0.0
    %2525 = vmatprep.subr.mxu0 0.0
    %2526 = vmatpush1.msra.mxu0 0.0
    %2527 = vmatprep.subr.mxu0 0.0
    %2528 = vmatpush1.msra.mxu0 0.0
    %2529 = vmatprep.subr.mxu0 0.0
    %2530 = vmatpush1.msra.mxu0 0.0
    %2531 = vmatprep.subr.mxu0 0.0
    %2532 = vmatpush1.msra.mxu0 0.0
    %2533 = vmatprep.subr.mxu0 0.0
    %2534 = vmatpush1.msra.mxu0 0.0
    %2535 = vmatprep.subr.mxu0 0.0
    %2536 = vmatpush1.msra.mxu0 0.0
    %2537 = vmatprep.subr.mxu0 0.0
    %2538 = vmatpush1.msra.mxu0 0.0
    %2539 = vmatprep.subr.mxu0 0.0
    %2540 = vmatpush1.msra.mxu0 0.0
    %2541 = vmatprep.subr.mxu0 0.0
    %2542 = vmatpush1.msra.mxu0 0.0
    %2543 = vmatprep.subr.mxu0 0.0
    %2544 = vmatpush1.msra.mxu0 0.0
    %2545 = vmatprep.subr.mxu0 0.0
    %2546 = vmatpush1.msra.mxu0 0.0
    %2547 = vmatprep.subr.mxu0 0.0
    %2548 = vmatpush1.msra.mxu0 0.0
    %2549 = vmatprep.subr.mxu0 0.0
    %2550 = vmatpush1.msra.mxu0 0.0
    %2551 = vmatprep.subr.mxu0 0.0
    %2552 = vmatpush1.msra.mxu0 0.0
    %2553 = vmatprep.subr.mxu0 0.0
    %2554 = vmatpush1.msra.mxu0 0.0
    %2555 = vmatprep.subr.mxu0 0.0
    %2556 = vmatpush1.msra.mxu0 0.0
    %2557 = vmatprep.mubr.f32.mxu0 0.0
    %2558 = vmatmul.mubr.f32.gmra.mrb[0].mxu0 %v2491
    %v2559 = vpop.f32.mrb[0].mxu0
    %v2560 = vadd.f32 0.0, %v2559
    %v2561 = vpop.f32.mrb[0].mxu0
    %2562 = vdwg.mxu0
    %s2563 = scalar_lea.vmem [#allocation5], 24
    %2564 = vst.msk [vmem:[%s2563] sm:$0xff] %vm298, %v2560
    %s2565 = scalar_lea.vmem [#allocation6], 48
    %2566 = vst [vmem:[%s2565] sm:$0xff] %v2386
    %2567 = vst [vmem:[%s2565 + $0x8] sm:$0xff] %v2387
    // Predicated region
    $region22: #{_token_reduction_call.1} parent=1 // pred_check
      _
    $region23: #{_token_reduction_call.1} parent=1 // pred_check_branch
      %2569 = sbr.rel (0) target = $region25
    $region24: #{_token_reduction_call.1} parent=1 // pred_region
      %s2571 = ssub.s32 512, 512
      %2572 = vsyncadd [#allocation4], %s2571
      %s2573 = sshll.u32 [#allocation5], 4
      %s2574 = int_to_ptr.vmem [resolvable:$true] %s2573
      %2579 = dma.vmem_to_hbm [thread:$0]  %s2574, 512, %s4, [#allocation4], 128, 128, 8
    $region25: #{_token_reduction_call.1} parent=1 // pred_fallthru
      _
    // Predicated region
    $region26: #{_token_reduction_call.1} parent=1 // pred_check
      _
    $region27: #{_token_reduction_call.1} parent=1 // pred_check_branch
      %2581 = sbr.rel (0) target = $region29
    $region28: #{_token_reduction_call.1} parent=1 // pred_region
      %s2583 = ssub.s32 1024, 1024
      %2584 = vsyncadd [#allocation7], %s2583
      %s2585 = sshll.u32 [#allocation6], 4
      %s2586 = int_to_ptr.vmem [resolvable:$true] %s2585
      %2591 = dma.vmem_to_hbm [thread:$0]  %s2586, 1024, %s5, [#allocation7], 256, 256, 16
    $region29: #{_token_reduction_call.1} parent=1 // pred_fallthru
      _
    // Predicated region
    $region30: #{_token_reduction_call.1} parent=1 // pred_check
      _
    $region31: #{_token_reduction_call.1} parent=1 // pred_check_branch
      %2593 = sbr.rel (0) target = $region33
    $region32: #{_token_reduction_call.1} parent=1 // pred_region
      %2594 = dma.done [#allocation4], 512
    $region33: #{_token_reduction_call.1} parent=1 // pred_fallthru
      _
    // Predicated region
    $region34: #{_token_reduction_call.1} parent=1 // pred_check
      _
    $region35: #{_token_reduction_call.1} parent=1 // pred_check_branch
      %2596 = sbr.rel (0) target = $region37
    $region36: #{_token_reduction_call.1} parent=1 // pred_region
      %2597 = dma.done [#allocation7], 1024
    $region37: #{_token_reduction_call.1} parent=1 // pred_fallthru
      _
    %2598 = vsyncpa [#allocation3], 1
    %2599 = vsyncpa [#allocation4], 1
    %2600 = vsyncpa [#allocation7], 1

</llo_original>
